<compile_context>
chip_gen: v5e
topology: v5e:2x2
jax: 0.10.0
libtpu: 0.0.40
codegen_flags: <defaults>
</compile_context>

<pallas_src>
import functools

import jax
import jax.numpy as jnp
from jax.experimental import pallas as pl
from jax.experimental.pallas import tpu as pltpu

LANE = 128
SUBLANE = 16          # bf16 sublane granule


def _round_up(x, m):
    return ((x + m - 1) // m) * m


def mlp_kernel(x_ref, w1_ref, b1_ref, w2_ref, b2_ref, o_ref):
    # x arrives in bf16 (expected fast path) -> astype is a no-op; it only
    # does work if a caller passes f32, keeping the kernel tolerant.
    x = x_ref[...].astype(jnp.bfloat16)
    # First linear + ReLU: bf16 operands on the MXU, f32 accumulation.
    h = jnp.dot(x, w1_ref[...], preferred_element_type=jnp.float32)
    h = jnp.maximum(h + b1_ref[...], 0.0)                  # (TB, Hp) + (1, Hp)
    # Second linear.
    out = jnp.dot(h.astype(jnp.bfloat16), w2_ref[...],
                  preferred_element_type=jnp.float32)
    o_ref[...] = (out + b2_ref[...]).astype(o_ref.dtype)   # bf16, lane-dense


def prepare_params(w1, b1, w2, b2):
    """Caller-side weight storage.

    Zero-pads the hidden and class dims up to multiples of 128 lanes and
    casts the weight matrices to bf16.  Padded b1 entries and padded w2
    rows/cols are zero, so the padding never leaks into the real outputs.
    Biases stay f32 (tiny, added post-accumulation).
    """
    in_size, hidden = w1.shape
    _, classes = w2.shape
    hp = _round_up(hidden, LANE)      # 500 -> 512
    cp = _round_up(classes, LANE)     # 10  -> 128
    w1p = jnp.zeros((in_size, hp), jnp.bfloat16).at[:, :hidden].set(
        w1.astype(jnp.bfloat16))
    b1p = jnp.zeros((1, hp), jnp.float32).at[:, :hidden].set(
        b1.reshape(1, -1).astype(jnp.float32))
    w2p = jnp.zeros((hp, cp), jnp.bfloat16).at[:hidden, :classes].set(
        w2.astype(jnp.bfloat16))
    b2p = jnp.zeros((1, cp), jnp.float32).at[:, :classes].set(
        b2.reshape(1, -1).astype(jnp.float32))
    return w1p, b1p, w2p, b2p


@functools.partial(jax.jit, static_argnames=("num_classes", "block_b"))
def net_forward(x, w1p, b1p, w2p, b2p, *, num_classes, block_b=512):
    """x: (B, input_size), bf16 preferred (f32 accepted); padded params from
    prepare_params.  Returns (B, num_classes) f32."""
    B, in_size = x.shape
    hp = w1p.shape[1]
    cp = w2p.shape[1]

    # Only pad truly tiny batches up to one sublane granule so the batch block
    # never exceeds the array extent.  Everything else relies on Pallas'
    # masked partial final block (no full-array copy of x).
    b_eff = max(B, SUBLANE)
    if b_eff != B:
        x = jnp.pad(x, ((0, b_eff - B), (0, 0)))

    # Batch tile:
    #  * multiple of 16 (bf16 sublane granule),
    #  * >=2 grid steps for mid/large batches so v7x megacore has work on
    #    both cores (no effect on single-core v5e/v6e),
    #  * capped at block_b (512 default amortizes per-step overhead and sits
    #    far inside even v5e's 16 MiB scoped-VMEM default when double-buffered).
    tb = min(block_b, _round_up(pl.cdiv(b_eff, 2), SUBLANE))
    grid = (pl.cdiv(b_eff, tb),)

    cost = pl.CostEstimate(
        flops=2 * b_eff * in_size * hp + 2 * b_eff * hp * cp,
        transcendentals=0,
        bytes_accessed=(b_eff * in_size * x.dtype.itemsize
                        + w1p.size * 2 + w2p.size * 2
                        + b1p.size * 4 + b2p.size * 4
                        + b_eff * cp * 2),
    )

    out = pl.pallas_call(
        mlp_kernel,
        out_shape=jax.ShapeDtypeStruct((b_eff, cp), jnp.bfloat16),
        grid=grid,
        in_specs=[
            pl.BlockSpec((tb, in_size), lambda i: (i, 0)),   # x: batch-tiled
            pl.BlockSpec((in_size, hp), lambda i: (0, 0)),   # w1: VMEM-resident
            pl.BlockSpec((1, hp),       lambda i: (0, 0)),   # b1: VMEM-resident
            pl.BlockSpec((hp, cp),      lambda i: (0, 0)),   # w2: VMEM-resident
            pl.BlockSpec((1, cp),       lambda i: (0, 0)),   # b2: VMEM-resident
        ],
        out_specs=pl.BlockSpec((tb, cp), lambda i: (i, 0)),  # lane-dense slab
        compiler_params=pltpu.CompilerParams(
            dimension_semantics=("parallel",)),              # megacore on v7x
        cost_estimate=cost,
    )(x, w1p, b1p, w2p, b2p)

    # Strip batch padding / lane-padding of the class dim; cast the tiny
    # (B, 10) result back to f32 to match the original module's output dtype.
    return out[:B, :num_classes].astype(jnp.float32)


def init_params(key, input_size=784, hidden_size=500, num_classes=10):
    """Deterministic PyTorch-style Linear init (uniform +-1/sqrt(fan_in)).
    Weights stored as (in_features, out_features) so the kernel computes
    x @ W directly."""
    k1, k2, k3, k4 = jax.random.split(key, 4)
    bound1 = 1.0 / jnp.sqrt(input_size)
    bound2 = 1.0 / jnp.sqrt(hidden_size)
    w1 = jax.random.uniform(k1, (input_size, hidden_size), jnp.float32,
                            -bound1, bound1)
    b1 = jax.random.uniform(k2, (hidden_size,), jnp.float32, -bound1, bound1)
    w2 = jax.random.uniform(k3, (hidden_size, num_classes), jnp.float32,
                            -bound2, bound2)
    b2 = jax.random.uniform(k4, (num_classes,), jnp.float32, -bound2, bound2)
    return w1, b1, w2, b2


if __name__ == "__main__":
    key = jax.random.PRNGKey(0)
    kx, kp = jax.random.split(key)

    batch = 8
    input_size, hidden_size, num_classes = 784, 500, 10

    # x is produced directly in bf16 (cast fused into the producer), so the
    # kernel's dominant HBM stream is half-width.
    x = jax.random.normal(kx, (batch, input_size), jnp.float32).astype(
        jnp.bfloat16)
    w1, b1, w2, b2 = init_params(kp, input_size, hidden_size, num_classes)
    w1p, b1p, w2p, b2p = prepare_params(w1, b1, w2, b2)

    out = net_forward(x, w1p, b1p, w2p, b2p, num_classes=num_classes)
    out = jax.block_until_ready(out)

    # Reference 1: same bf16-input / bf16-weight / f32-accumulate math.
    h_ref = jnp.maximum(
        jnp.dot(x, w1p, preferred_element_type=jnp.float32) + b1p, 0.0)
    ref_bf16 = (jnp.dot(h_ref.astype(jnp.bfloat16), w2p,
                        preferred_element_type=jnp.float32)
                + b2p)[:, :num_classes]
    # Reference 2: original full-f32 module semantics (loose tolerance for
    # the bf16 input/weight/output quantization).
    xf = x.astype(jnp.float32)
    ref_f32 = jnp.maximum(xf @ w1 + b1, 0.0) @ w2 + b2

    assert out.shape == (batch, num_classes)
    assert out.dtype == jnp.float32
    assert jnp.allclose(out, ref_bf16, atol=2e-2, rtol=2e-2), \
        float(jnp.max(jnp.abs(out - ref_bf16)))
    assert jnp.allclose(out, ref_f32, atol=1e-1, rtol=1e-1), \
        float(jnp.max(jnp.abs(out - ref_f32)))

    print("KERNEL_OK")
</pallas_src>

<mosaic_0001>
module attributes {stable_mosaic.version = 11 : i64} {
  func.func @mlp_kernel(%arg0: i32, %arg1: memref<16x784xbf16, #tpu.memory_space<vmem>>, %arg2: memref<784x512xbf16, #tpu.memory_space<vmem>>, %arg3: memref<1x512xf32, #tpu.memory_space<vmem>>, %arg4: memref<512x128xbf16, #tpu.memory_space<vmem>>, %arg5: memref<1x128xf32, #tpu.memory_space<vmem>>, %arg6: memref<16x128xbf16, #tpu.memory_space<vmem>>) attributes {dimension_semantics = [#tpu.dimension_semantics<parallel>], iteration_bounds = array<i64: 1>, scalar_prefetch = 0 : i64, scratch_operands = 0 : i64, tpu.core_type = #tpu.core_type<tc>, window_params = [{transform_indices = @transform_0, window_bounds = array<i64: 16, 784>}, {pipeline_mode = #tpu.pipeline_mode<synchronous>, transform_indices = @transform_1, window_bounds = array<i64: 784, 512>}, {pipeline_mode = #tpu.pipeline_mode<synchronous>, transform_indices = @transform_2, window_bounds = array<i64: 1, 512>}, {pipeline_mode = #tpu.pipeline_mode<synchronous>, transform_indices = @transform_3, window_bounds = array<i64: 512, 128>}, {pipeline_mode = #tpu.pipeline_mode<synchronous>, transform_indices = @transform_4, window_bounds = array<i64: 1, 128>}, {transform_indices = @transform_5, window_bounds = array<i64: 16, 128>}]} {
    %c0 = arith.constant 0 : index
    %c0_0 = arith.constant 0 : index
    %0 = vector.load %arg1[%c0, %c0_0] : memref<16x784xbf16, #tpu.memory_space<vmem>>, vector<16x784xbf16>
    %c0_1 = arith.constant 0 : index
    %c0_2 = arith.constant 0 : index
    %1 = vector.load %arg2[%c0_1, %c0_2] : memref<784x512xbf16, #tpu.memory_space<vmem>>, vector<784x512xbf16>
    %cst = arith.constant dense<0.000000e+00> : vector<16x512xf32>
    %2 = tpu.matmul %0, %1, %cst {dimension_numbers = #tpu.dot_dimension_numbers<[1], [0], [0], [1], [0, 0, 1, 1], [], []>} : vector<16x784xbf16>, vector<784x512xbf16>, vector<16x512xf32> -> vector<16x512xf32>
    %c0_3 = arith.constant 0 : index
    %c0_4 = arith.constant 0 : index
    %3 = vector.load %arg3[%c0_3, %c0_4] : memref<1x512xf32, #tpu.memory_space<vmem>>, vector<1x512xf32>
    %4 = vector.broadcast %3 : vector<1x512xf32> to vector<16x512xf32>
    %5 = arith.addf %2, %4 : vector<16x512xf32>
    %cst_5 = arith.constant 0.000000e+00 : f32
    %6 = vector.broadcast %cst_5 : f32 to vector<16x512xf32>
    %7 = arith.maximumf %5, %6 : vector<16x512xf32>
    %8 = arith.truncf %7 : vector<16x512xf32> to vector<16x512xbf16>
    %c0_6 = arith.constant 0 : index
    %c0_7 = arith.constant 0 : index
    %9 = vector.load %arg4[%c0_6, %c0_7] : memref<512x128xbf16, #tpu.memory_space<vmem>>, vector<512x128xbf16>
    %cst_8 = arith.constant dense<0.000000e+00> : vector<16x128xf32>
    %10 = tpu.matmul %8, %9, %cst_8 {dimension_numbers = #tpu.dot_dimension_numbers<[1], [0], [0], [1], [0, 0, 1, 1], [], []>} : vector<16x512xbf16>, vector<512x128xbf16>, vector<16x128xf32> -> vector<16x128xf32>
    %c0_9 = arith.constant 0 : index
    %c0_10 = arith.constant 0 : index
    %11 = vector.load %arg5[%c0_9, %c0_10] : memref<1x128xf32, #tpu.memory_space<vmem>>, vector<1x128xf32>
    %12 = vector.broadcast %11 : vector<1x128xf32> to vector<16x128xf32>
    %13 = arith.addf %10, %12 : vector<16x128xf32>
    %14 = arith.truncf %13 : vector<16x128xf32> to vector<16x128xbf16>
    %c0_11 = arith.constant 0 : index
    %c0_12 = arith.constant 0 : index
    %15 = vector.load %arg6[%c0_11, %c0_12] : memref<16x128xbf16, #tpu.memory_space<vmem>>, vector<16x128xbf16>
    tpu.vector_store %arg6[%c0_11, %c0_12], %14 {strides = array<i32>} : memref<16x128xbf16, #tpu.memory_space<vmem>>, vector<16x128xbf16>,
    return
  }
  func.func @transform_0(%arg0: i32) -> (i32, i32) {
    %c0_i32 = arith.constant 0 : i32
    %c0_i32_0 = arith.constant 0 : i32
    return %arg0, %c0_i32 : i32, i32
  }
  func.func @transform_1(%arg0: i32) -> (i32, i32) {
    %c0_i32 = arith.constant 0 : i32
    %c0_i32_0 = arith.constant 0 : i32
    %c0_i32_1 = arith.constant 0 : i32
    return %c0_i32, %c0_i32_0 : i32, i32
  }
  func.func @transform_2(%arg0: i32) -> (i32, i32) {
    %c0_i32 = arith.constant 0 : i32
    %c0_i32_0 = arith.constant 0 : i32
    %c0_i32_1 = arith.constant 0 : i32
    return %c0_i32, %c0_i32_0 : i32, i32
  }
  func.func @transform_3(%arg0: i32) -> (i32, i32) {
    %c0_i32 = arith.constant 0 : i32
    %c0_i32_0 = arith.constant 0 : i32
    %c0_i32_1 = arith.constant 0 : i32
    return %c0_i32, %c0_i32_0 : i32, i32
  }
  func.func @transform_4(%arg0: i32) -> (i32, i32) {
    %c0_i32 = arith.constant 0 : i32
    %c0_i32_0 = arith.constant 0 : i32
    %c0_i32_1 = arith.constant 0 : i32
    return %c0_i32, %c0_i32_0 : i32, i32
  }
  func.func @transform_5(%arg0: i32) -> (i32, i32) {
    %c0_i32 = arith.constant 0 : i32
    %c0_i32_0 = arith.constant 0 : i32
    return %arg0, %c0_i32 : i32, i32
  }
}

</mosaic_0001>

<llo_original>
// kernel: net_forward.1
$region0: #{net_forward.1}
  #allocation0 [shape = 'u32[]', space=smem, size = 0x4, offset = 0x4, fixed_abs, tag = 'smem constant byte address 0x4 - core index']
  #allocation1 [shape = 'u32[72,128]{1,0:T(1,128)}', space=vmem, size = 0x9000, scoped, tag = 'internal scratch']
  %s0 = inlined_call_operand.vmem [shape: bf16[16,784], index: 0, kind: input, shape index: {}]
  %s1 = inlined_call_operand.hbm [shape: bf16[784,512], index: 1, kind: input, shape index: {}]
  %s2 = inlined_call_operand.vmem [shape: f32[1,512], index: 2, kind: input, shape index: {}]
  %s3 = inlined_call_operand.hbm [shape: bf16[512,128], index: 3, kind: input, shape index: {}]
  %s4 = inlined_call_operand.vmem [shape: f32[1,128], index: 4, kind: input, shape index: {}]
  %s5 = inlined_call_operand.vmem [shape: bf16[16,128], index: 5, kind: output, shape index: {}]
  %s6 = sld [smem:[#allocation0]]
  $region38: #{net_forward.1} parent=0
    _
  %s8 = ssub.s32 1, %s6
  %s9 = scalar_select 0, %s8, %s6
  $region1: #{net_forward.1} parent=0
    #allocation2 [shape = 'u8[802816]{0}', space=vmem, size = 0xc4000, scoped, tag = 'input window, operand 1, single buffered']
    #allocation3 [shape = 's32[1]{0}', space=sflag, size = 0x4, scoped, tag = 'scoped memory for net_forward.1']
    #allocation4 [shape = 'u8[131072]{0}', space=vmem, size = 0x20000, scoped, tag = 'input window, operand 3, single buffered']
    #allocation5 [shape = 's32[1]{0}', space=sflag, size = 0x4, scoped, tag = 'scoped memory for net_forward.1']
    %10 = vsyncpa [#allocation3], 0
    %11 = vsyncpa [#allocation5], 0
    // Predicated region
    $region2: #{net_forward.1} parent=1 // pred_check
      _
    $region3: #{net_forward.1} parent=1 // pred_check_branch
      %13 = sbr.rel (0) target = $region5
    $region4: #{net_forward.1} parent=1 // pred_region
      _
    $region5: #{net_forward.1} parent=1 // pred_fallthru
      _
    // Predicated region
    $region6: #{net_forward.1} parent=1 // pred_check
      _
    $region7: #{net_forward.1} parent=1 // pred_check_branch
      %15 = sbr.rel (0) target = $region9
    $region8: #{net_forward.1} parent=1 // pred_region
      %17 = vsyncadd [#allocation3], 0
      %s18 = sshll.u32 %s1, 4
      %s19 = int_to_ptr.hbm [resolvable:$true] %s18
      %s20 = sshll.u32 [#allocation2], 4
      %s21 = int_to_ptr.vmem [resolvable:$true] %s20
      %26 = dma.hbm_to_vmem [thread:$0]  %s19, 25088, %s21, [#allocation3], 256, 256, 16
    $region9: #{net_forward.1} parent=1 // pred_fallthru
      _
    // Predicated region
    $region10: #{net_forward.1} parent=1 // pred_check
      _
    $region11: #{net_forward.1} parent=1 // pred_check_branch
      %28 = sbr.rel (0) target = $region13
    $region12: #{net_forward.1} parent=1 // pred_region
      _
    $region13: #{net_forward.1} parent=1 // pred_fallthru
      _
    // Predicated region
    $region14: #{net_forward.1} parent=1 // pred_check
      _
    $region15: #{net_forward.1} parent=1 // pred_check_branch
      %30 = sbr.rel (0) target = $region17
    $region16: #{net_forward.1} parent=1 // pred_region
      %32 = vsyncadd [#allocation5], 0
      %s33 = sshll.u32 %s3, 4
      %s34 = int_to_ptr.hbm [resolvable:$true] %s33
      %s35 = sshll.u32 [#allocation4], 4
      %s36 = int_to_ptr.vmem [resolvable:$true] %s35
      %41 = dma.hbm_to_vmem [thread:$0]  %s34, 4096, %s36, [#allocation5], 64, 64, 4
    $region17: #{net_forward.1} parent=1 // pred_fallthru
      _
    // Predicated region
    $region18: #{net_forward.1} parent=1 // pred_check
      _
    $region19: #{net_forward.1} parent=1 // pred_check_branch
      %43 = sbr.rel (0) target = $region21
    $region20: #{net_forward.1} parent=1 // pred_region
      _
    $region21: #{net_forward.1} parent=1 // pred_fallthru
      _
    // Predicated region
    $region22: #{net_forward.1} parent=1 // pred_check
      _
    $region23: #{net_forward.1} parent=1 // pred_check_branch
      %45 = sbr.rel (0) target = $region25
    $region24: #{net_forward.1} parent=1 // pred_region
      %47 = dma.done [#allocation3], 25088
    $region25: #{net_forward.1} parent=1 // pred_fallthru
      _
    // Predicated region
    $region26: #{net_forward.1} parent=1 // pred_check
      _
    $region27: #{net_forward.1} parent=1 // pred_check_branch
      %49 = sbr.rel (0) target = $region29
    $region28: #{net_forward.1} parent=1 // pred_region
      %51 = dma.done [#allocation5], 4096
    $region29: #{net_forward.1} parent=1 // pred_fallthru
      _
    %v53 = vld [vmem:[%s0] sm:$0xff]
    %v54 = vld [vmem:[%s0 + $0x8] sm:$0xff]
    %v55 = vld [vmem:[%s0 + $0x10] sm:$0xff]
    %v56 = vld [vmem:[%s0 + $0x18] sm:$0xf]
    %v57 = vld [vmem:[%s0 + $0x1c] sm:$0xff]
    %v58 = vld [vmem:[%s0 + $0x24] sm:$0xff]
    %v59 = vld [vmem:[%s0 + $0x2c] sm:$0xff]
    %v60 = vld [vmem:[%s0 + $0x34] sm:$0xf]
    %v61 = vld [vmem:[#allocation2] sm:$0xff]
    %v62 = vld [vmem:[#allocation2 + $0x8] sm:$0xff]
    %v63 = vld [vmem:[#allocation2 + $0x10] sm:$0xff]
    %v64 = vld [vmem:[#allocation2 + $0x18] sm:$0xff]
    %v65 = vld [vmem:[#allocation2 + $0x20] sm:$0xff]
    %v66 = vld [vmem:[#allocation2 + $0x28] sm:$0xff]
    %v67 = vld [vmem:[#allocation2 + $0x30] sm:$0xff]
    %v68 = vld [vmem:[#allocation2 + $0x38] sm:$0xff]
    %v69 = vld [vmem:[#allocation2 + $0x40] sm:$0xff]
    %v70 = vld [vmem:[#allocation2 + $0x48] sm:$0xff]
    %v71 = vld [vmem:[#allocation2 + $0x50] sm:$0xff]
    %v72 = vld [vmem:[#allocation2 + $0x58] sm:$0xff]
    %v73 = vld [vmem:[#allocation2 + $0x60] sm:$0xff]
    %v74 = vld [vmem:[#allocation2 + $0x68] sm:$0xff]
    %v75 = vld [vmem:[#allocation2 + $0x70] sm:$0xff]
    %v76 = vld [vmem:[#allocation2 + $0x78] sm:$0xff]
    %v77 = vld [vmem:[#allocation2 + $0x80] sm:$0xff]
    %v78 = vld [vmem:[#allocation2 + $0x88] sm:$0xff]
    %v79 = vld [vmem:[#allocation2 + $0x90] sm:$0xff]
    %v80 = vld [vmem:[#allocation2 + $0x98] sm:$0xff]
    %v81 = vld [vmem:[#allocation2 + $0xa0] sm:$0xff]
    %v82 = vld [vmem:[#allocation2 + $0xa8] sm:$0xff]
    %v83 = vld [vmem:[#allocation2 + $0xb0] sm:$0xff]
    %v84 = vld [vmem:[#allocation2 + $0xb8] sm:$0xff]
    %v85 = vld [vmem:[#allocation2 + $0xc0] sm:$0xff]
    %v86 = vld [vmem:[#allocation2 + $0xc8] sm:$0xff]
    %v87 = vld [vmem:[#allocation2 + $0xd0] sm:$0xff]
    %v88 = vld [vmem:[#allocation2 + $0xd8] sm:$0xff]
    %v89 = vld [vmem:[#allocation2 + $0xe0] sm:$0xff]
    %v90 = vld [vmem:[#allocation2 + $0xe8] sm:$0xff]
    %v91 = vld [vmem:[#allocation2 + $0xf0] sm:$0xff]
    %v92 = vld [vmem:[#allocation2 + $0xf8] sm:$0xff]
    %v93 = vld [vmem:[#allocation2 + $0x100] sm:$0xff]
    %v94 = vld [vmem:[#allocation2 + $0x108] sm:$0xff]
    %v95 = vld [vmem:[#allocation2 + $0x110] sm:$0xff]
    %v96 = vld [vmem:[#allocation2 + $0x118] sm:$0xff]
    %v97 = vld [vmem:[#allocation2 + $0x120] sm:$0xff]
    %v98 = vld [vmem:[#allocation2 + $0x128] sm:$0xff]
    %v99 = vld [vmem:[#allocation2 + $0x130] sm:$0xff]
    %v100 = vld [vmem:[#allocation2 + $0x138] sm:$0xff]
    %v101 = vld [vmem:[#allocation2 + $0x140] sm:$0xff]
    %v102 = vld [vmem:[#allocation2 + $0x148] sm:$0xff]
    %v103 = vld [vmem:[#allocation2 + $0x150] sm:$0xff]
    %v104 = vld [vmem:[#allocation2 + $0x158] sm:$0xff]
    %v105 = vld [vmem:[#allocation2 + $0x160] sm:$0xff]
    %v106 = vld [vmem:[#allocation2 + $0x168] sm:$0xff]
    %v107 = vld [vmem:[#allocation2 + $0x170] sm:$0xff]
    %v108 = vld [vmem:[#allocation2 + $0x178] sm:$0xff]
    %v109 = vld [vmem:[#allocation2 + $0x180] sm:$0xff]
    %v110 = vld [vmem:[#allocation2 + $0x188] sm:$0xff]
    %v111 = vld [vmem:[#allocation2 + $0x190] sm:$0xff]
    %v112 = vld [vmem:[#allocation2 + $0x198] sm:$0xff]
    %v113 = vld [vmem:[#allocation2 + $0x1a0] sm:$0xff]
    %v114 = vld [vmem:[#allocation2 + $0x1a8] sm:$0xff]
    %v115 = vld [vmem:[#allocation2 + $0x1b0] sm:$0xff]
    %v116 = vld [vmem:[#allocation2 + $0x1b8] sm:$0xff]
    %v117 = vld [vmem:[#allocation2 + $0x1c0] sm:$0xff]
    %v118 = vld [vmem:[#allocation2 + $0x1c8] sm:$0xff]
    %v119 = vld [vmem:[#allocation2 + $0x1d0] sm:$0xff]
    %v120 = vld [vmem:[#allocation2 + $0x1d8] sm:$0xff]
    %v121 = vld [vmem:[#allocation2 + $0x1e0] sm:$0xff]
    %v122 = vld [vmem:[#allocation2 + $0x1e8] sm:$0xff]
    %v123 = vld [vmem:[#allocation2 + $0x1f0] sm:$0xff]
    %v124 = vld [vmem:[#allocation2 + $0x1f8] sm:$0xff]
    %v125 = vld [vmem:[#allocation2 + $0x200] sm:$0xff]
    %v126 = vld [vmem:[#allocation2 + $0x208] sm:$0xff]
    %v127 = vld [vmem:[#allocation2 + $0x210] sm:$0xff]
    %v128 = vld [vmem:[#allocation2 + $0x218] sm:$0xff]
    %v129 = vld [vmem:[#allocation2 + $0x220] sm:$0xff]
    %v130 = vld [vmem:[#allocation2 + $0x228] sm:$0xff]
    %v131 = vld [vmem:[#allocation2 + $0x230] sm:$0xff]
    %v132 = vld [vmem:[#allocation2 + $0x238] sm:$0xff]
    %v133 = vld [vmem:[#allocation2 + $0x240] sm:$0xff]
    %v134 = vld [vmem:[#allocation2 + $0x248] sm:$0xff]
    %v135 = vld [vmem:[#allocation2 + $0x250] sm:$0xff]
    %v136 = vld [vmem:[#allocation2 + $0x258] sm:$0xff]
    %v137 = vld [vmem:[#allocation2 + $0x260] sm:$0xff]
    %v138 = vld [vmem:[#allocation2 + $0x268] sm:$0xff]
    %v139 = vld [vmem:[#allocation2 + $0x270] sm:$0xff]
    %v140 = vld [vmem:[#allocation2 + $0x278] sm:$0xff]
    %v141 = vld [vmem:[#allocation2 + $0x280] sm:$0xff]
    %v142 = vld [vmem:[#allocation2 + $0x288] sm:$0xff]
    %v143 = vld [vmem:[#allocation2 + $0x290] sm:$0xff]
    %v144 = vld [vmem:[#allocation2 + $0x298] sm:$0xff]
    %v145 = vld [vmem:[#allocation2 + $0x2a0] sm:$0xff]
    %v146 = vld [vmem:[#allocation2 + $0x2a8] sm:$0xff]
    %v147 = vld [vmem:[#allocation2 + $0x2b0] sm:$0xff]
    %v148 = vld [vmem:[#allocation2 + $0x2b8] sm:$0xff]
    %v149 = vld [vmem:[#allocation2 + $0x2c0] sm:$0xff]
    %v150 = vld [vmem:[#allocation2 + $0x2c8] sm:$0xff]
    %v151 = vld [vmem:[#allocation2 + $0x2d0] sm:$0xff]
    %v152 = vld [vmem:[#allocation2 + $0x2d8] sm:$0xff]
    %v153 = vld [vmem:[#allocation2 + $0x2e0] sm:$0xff]
    %v154 = vld [vmem:[#allocation2 + $0x2e8] sm:$0xff]
    %v155 = vld [vmem:[#allocation2 + $0x2f0] sm:$0xff]
    %v156 = vld [vmem:[#allocation2 + $0x2f8] sm:$0xff]
    %v157 = vld [vmem:[#allocation2 + $0x300] sm:$0xff]
    %v158 = vld [vmem:[#allocation2 + $0x308] sm:$0xff]
    %v159 = vld [vmem:[#allocation2 + $0x310] sm:$0xff]
    %v160 = vld [vmem:[#allocation2 + $0x318] sm:$0xff]
    %v161 = vld [vmem:[#allocation2 + $0x320] sm:$0xff]
    %v162 = vld [vmem:[#allocation2 + $0x328] sm:$0xff]
    %v163 = vld [vmem:[#allocation2 + $0x330] sm:$0xff]
    %v164 = vld [vmem:[#allocation2 + $0x338] sm:$0xff]
    %v165 = vld [vmem:[#allocation2 + $0x340] sm:$0xff]
    %v166 = vld [vmem:[#allocation2 + $0x348] sm:$0xff]
    %v167 = vld [vmem:[#allocation2 + $0x350] sm:$0xff]
    %v168 = vld [vmem:[#allocation2 + $0x358] sm:$0xff]
    %v169 = vld [vmem:[#allocation2 + $0x360] sm:$0xff]
    %v170 = vld [vmem:[#allocation2 + $0x368] sm:$0xff]
    %v171 = vld [vmem:[#allocation2 + $0x370] sm:$0xff]
    %v172 = vld [vmem:[#allocation2 + $0x378] sm:$0xff]
    %v173 = vld [vmem:[#allocation2 + $0x380] sm:$0xff]
    %v174 = vld [vmem:[#allocation2 + $0x388] sm:$0xff]
    %v175 = vld [vmem:[#allocation2 + $0x390] sm:$0xff]
    %v176 = vld [vmem:[#allocation2 + $0x398] sm:$0xff]
    %v177 = vld [vmem:[#allocation2 + $0x3a0] sm:$0xff]
    %v178 = vld [vmem:[#allocation2 + $0x3a8] sm:$0xff]
    %v179 = vld [vmem:[#allocation2 + $0x3b0] sm:$0xff]
    %v180 = vld [vmem:[#allocation2 + $0x3b8] sm:$0xff]
    %v181 = vld [vmem:[#allocation2 + $0x3c0] sm:$0xff]
    %v182 = vld [vmem:[#allocation2 + $0x3c8] sm:$0xff]
    %v183 = vld [vmem:[#allocation2 + $0x3d0] sm:$0xff]
    %v184 = vld [vmem:[#allocation2 + $0x3d8] sm:$0xff]
    %v185 = vld [vmem:[#allocation2 + $0x3e0] sm:$0xff]
    %v186 = vld [vmem:[#allocation2 + $0x3e8] sm:$0xff]
    %v187 = vld [vmem:[#allocation2 + $0x3f0] sm:$0xff]
    %v188 = vld [vmem:[#allocation2 + $0x3f8] sm:$0xff]
    %v189 = vld [vmem:[#allocation2 + $0x400] sm:$0xff]
    %v190 = vld [vmem:[#allocation2 + $0x408] sm:$0xff]
    %v191 = vld [vmem:[#allocation2 + $0x410] sm:$0xff]
    %v192 = vld [vmem:[#allocation2 + $0x418] sm:$0xff]
    %v193 = vld [vmem:[#allocation2 + $0x420] sm:$0xff]
    %v194 = vld [vmem:[#allocation2 + $0x428] sm:$0xff]
    %v195 = vld [vmem:[#allocation2 + $0x430] sm:$0xff]
    %v196 = vld [vmem:[#allocation2 + $0x438] sm:$0xff]
    %v197 = vld [vmem:[#allocation2 + $0x440] sm:$0xff]
    %v198 = vld [vmem:[#allocation2 + $0x448] sm:$0xff]
    %v199 = vld [vmem:[#allocation2 + $0x450] sm:$0xff]
    %v200 = vld [vmem:[#allocation2 + $0x458] sm:$0xff]
    %v201 = vld [vmem:[#allocation2 + $0x460] sm:$0xff]
    %v202 = vld [vmem:[#allocation2 + $0x468] sm:$0xff]
    %v203 = vld [vmem:[#allocation2 + $0x470] sm:$0xff]
    %v204 = vld [vmem:[#allocation2 + $0x478] sm:$0xff]
    %v205 = vld [vmem:[#allocation2 + $0x480] sm:$0xff]
    %v206 = vld [vmem:[#allocation2 + $0x488] sm:$0xff]
    %v207 = vld [vmem:[#allocation2 + $0x490] sm:$0xff]
    %v208 = vld [vmem:[#allocation2 + $0x498] sm:$0xff]
    %v209 = vld [vmem:[#allocation2 + $0x4a0] sm:$0xff]
    %v210 = vld [vmem:[#allocation2 + $0x4a8] sm:$0xff]
    %v211 = vld [vmem:[#allocation2 + $0x4b0] sm:$0xff]
    %v212 = vld [vmem:[#allocation2 + $0x4b8] sm:$0xff]
    %v213 = vld [vmem:[#allocation2 + $0x4c0] sm:$0xff]
    %v214 = vld [vmem:[#allocation2 + $0x4c8] sm:$0xff]
    %v215 = vld [vmem:[#allocation2 + $0x4d0] sm:$0xff]
    %v216 = vld [vmem:[#allocation2 + $0x4d8] sm:$0xff]
    %v217 = vld [vmem:[#allocation2 + $0x4e0] sm:$0xff]
    %v218 = vld [vmem:[#allocation2 + $0x4e8] sm:$0xff]
    %v219 = vld [vmem:[#allocation2 + $0x4f0] sm:$0xff]
    %v220 = vld [vmem:[#allocation2 + $0x4f8] sm:$0xff]
    %v221 = vld [vmem:[#allocation2 + $0x500] sm:$0xff]
    %v222 = vld [vmem:[#allocation2 + $0x508] sm:$0xff]
    %v223 = vld [vmem:[#allocation2 + $0x510] sm:$0xff]
    %v224 = vld [vmem:[#allocation2 + $0x518] sm:$0xff]
    %v225 = vld [vmem:[#allocation2 + $0x520] sm:$0xff]
    %v226 = vld [vmem:[#allocation2 + $0x528] sm:$0xff]
    %v227 = vld [vmem:[#allocation2 + $0x530] sm:$0xff]
    %v228 = vld [vmem:[#allocation2 + $0x538] sm:$0xff]
    %v229 = vld [vmem:[#allocation2 + $0x540] sm:$0xff]
    %v230 = vld [vmem:[#allocation2 + $0x548] sm:$0xff]
    %v231 = vld [vmem:[#allocation2 + $0x550] sm:$0xff]
    %v232 = vld [vmem:[#allocation2 + $0x558] sm:$0xff]
    %v233 = vld [vmem:[#allocation2 + $0x560] sm:$0xff]
    %v234 = vld [vmem:[#allocation2 + $0x568] sm:$0xff]
    %v235 = vld [vmem:[#allocation2 + $0x570] sm:$0xff]
    %v236 = vld [vmem:[#allocation2 + $0x578] sm:$0xff]
    %v237 = vld [vmem:[#allocation2 + $0x580] sm:$0xff]
    %v238 = vld [vmem:[#allocation2 + $0x588] sm:$0xff]
    %v239 = vld [vmem:[#allocation2 + $0x590] sm:$0xff]
    %v240 = vld [vmem:[#allocation2 + $0x598] sm:$0xff]
    %v241 = vld [vmem:[#allocation2 + $0x5a0] sm:$0xff]
    %v242 = vld [vmem:[#allocation2 + $0x5a8] sm:$0xff]
    %v243 = vld [vmem:[#allocation2 + $0x5b0] sm:$0xff]
    %v244 = vld [vmem:[#allocation2 + $0x5b8] sm:$0xff]
    %v245 = vld [vmem:[#allocation2 + $0x5c0] sm:$0xff]
    %v246 = vld [vmem:[#allocation2 + $0x5c8] sm:$0xff]
    %v247 = vld [vmem:[#allocation2 + $0x5d0] sm:$0xff]
    %v248 = vld [vmem:[#allocation2 + $0x5d8] sm:$0xff]
    %v249 = vld [vmem:[#allocation2 + $0x5e0] sm:$0xff]
    %v250 = vld [vmem:[#allocation2 + $0x5e8] sm:$0xff]
    %v251 = vld [vmem:[#allocation2 + $0x5f0] sm:$0xff]
    %v252 = vld [vmem:[#allocation2 + $0x5f8] sm:$0xff]
    %v253 = vld [vmem:[#allocation2 + $0x600] sm:$0xff]
    %v254 = vld [vmem:[#allocation2 + $0x608] sm:$0xff]
    %v255 = vld [vmem:[#allocation2 + $0x610] sm:$0xff]
    %v256 = vld [vmem:[#allocation2 + $0x618] sm:$0xff]
    %v257 = vld [vmem:[%s2] sm:$0xf]
    %v259 = vperm.slane %v257, 0
    %v260 = vperm.slane %v257, 1
    %v261 = vperm.slane %v257, 2
    %v262 = vperm.slane %v257, 3
    %v275 = vunpack.c.l.b16 %v53
    %v276 = vunpack.c.h.b16 %v53
    %v277 = vunpack.c.l.b16 %v54
    %v278 = vunpack.c.h.b16 %v54
    %v279 = vunpack.c.l.b16 %v55
    %v280 = vunpack.c.h.b16 %v55
    %v281 = vunpack.c.l.b16 %v56
    %v282 = vunpack.c.l.b16 %v57
    %v283 = vunpack.c.h.b16 %v57
    %v284 = vunpack.c.l.b16 %v58
    %v285 = vunpack.c.h.b16 %v58
    %v286 = vunpack.c.l.b16 %v59
    %v287 = vunpack.c.h.b16 %v59
    %v288 = vunpack.c.l.b16 %v60
    %v289 = vpack.c.b16 %v282, %v275
    %v290 = vpack.c.b16 %v283, %v276
    %v291 = vpack.c.b16 %v284, %v277
    %v292 = vpack.c.b16 %v285, %v278
    %v293 = vpack.c.b16 %v286, %v279
    %v294 = vpack.c.b16 %v287, %v280
    %v295 = vpack.c.b16 %v288, %v281
    %v498 = vunpack.c.l.b16 %v61
    %v499 = vunpack.c.h.b16 %v61
    %v500 = vunpack.c.l.b16 %v62
    %v501 = vunpack.c.h.b16 %v62
    %v502 = vunpack.c.l.b16 %v63
    %v503 = vunpack.c.h.b16 %v63
    %v504 = vunpack.c.l.b16 %v64
    %v505 = vunpack.c.h.b16 %v64
    %v506 = vunpack.c.l.b16 %v65
    %v507 = vunpack.c.h.b16 %v65
    %v508 = vunpack.c.l.b16 %v66
    %v509 = vunpack.c.h.b16 %v66
    %v510 = vunpack.c.l.b16 %v67
    %v511 = vunpack.c.h.b16 %v67
    %v512 = vunpack.c.l.b16 %v68
    %v513 = vunpack.c.h.b16 %v68
    %v514 = vunpack.c.l.b16 %v69
    %v515 = vunpack.c.h.b16 %v69
    %v516 = vunpack.c.l.b16 %v70
    %v517 = vunpack.c.h.b16 %v70
    %v518 = vunpack.c.l.b16 %v71
    %v519 = vunpack.c.h.b16 %v71
    %v520 = vunpack.c.l.b16 %v72
    %v521 = vunpack.c.h.b16 %v72
    %v522 = vunpack.c.l.b16 %v73
    %v523 = vunpack.c.h.b16 %v73
    %v524 = vunpack.c.l.b16 %v74
    %v525 = vunpack.c.h.b16 %v74
    %v526 = vunpack.c.l.b16 %v75
    %v527 = vunpack.c.h.b16 %v75
    %v528 = vunpack.c.l.b16 %v76
    %v529 = vunpack.c.h.b16 %v76
    %v530 = vunpack.c.l.b16 %v77
    %v531 = vunpack.c.h.b16 %v77
    %v532 = vunpack.c.l.b16 %v78
    %v533 = vunpack.c.h.b16 %v78
    %v534 = vunpack.c.l.b16 %v79
    %v535 = vunpack.c.h.b16 %v79
    %v536 = vunpack.c.l.b16 %v80
    %v537 = vunpack.c.h.b16 %v80
    %v538 = vunpack.c.l.b16 %v81
    %v539 = vunpack.c.h.b16 %v81
    %v540 = vunpack.c.l.b16 %v82
    %v541 = vunpack.c.h.b16 %v82
    %v542 = vunpack.c.l.b16 %v83
    %v543 = vunpack.c.h.b16 %v83
    %v544 = vunpack.c.l.b16 %v84
    %v545 = vunpack.c.h.b16 %v84
    %v546 = vunpack.c.l.b16 %v85
    %v547 = vunpack.c.h.b16 %v85
    %v548 = vunpack.c.l.b16 %v86
    %v549 = vunpack.c.h.b16 %v86
    %v550 = vunpack.c.l.b16 %v87
    %v551 = vunpack.c.h.b16 %v87
    %v552 = vunpack.c.l.b16 %v88
    %v553 = vunpack.c.h.b16 %v88
    %v554 = vunpack.c.l.b16 %v89
    %v555 = vunpack.c.h.b16 %v89
    %v556 = vunpack.c.l.b16 %v90
    %v557 = vunpack.c.h.b16 %v90
    %v558 = vunpack.c.l.b16 %v91
    %v559 = vunpack.c.h.b16 %v91
    %v560 = vunpack.c.l.b16 %v92
    %v561 = vunpack.c.h.b16 %v92
    %v562 = vunpack.c.l.b16 %v93
    %v563 = vunpack.c.h.b16 %v93
    %v564 = vunpack.c.l.b16 %v94
    %v565 = vunpack.c.h.b16 %v94
    %v566 = vunpack.c.l.b16 %v95
    %v567 = vunpack.c.h.b16 %v95
    %v568 = vunpack.c.l.b16 %v96
    %v569 = vunpack.c.h.b16 %v96
    %v570 = vunpack.c.l.b16 %v97
    %v571 = vunpack.c.h.b16 %v97
    %v572 = vunpack.c.l.b16 %v98
    %v573 = vunpack.c.h.b16 %v98
    %v574 = vunpack.c.l.b16 %v99
    %v575 = vunpack.c.h.b16 %v99
    %v576 = vunpack.c.l.b16 %v100
    %v577 = vunpack.c.h.b16 %v100
    %v578 = vunpack.c.l.b16 %v101
    %v579 = vunpack.c.h.b16 %v101
    %v580 = vunpack.c.l.b16 %v102
    %v581 = vunpack.c.h.b16 %v102
    %v582 = vunpack.c.l.b16 %v103
    %v583 = vunpack.c.h.b16 %v103
    %v584 = vunpack.c.l.b16 %v104
    %v585 = vunpack.c.h.b16 %v104
    %v586 = vunpack.c.l.b16 %v105
    %v587 = vunpack.c.h.b16 %v105
    %v588 = vunpack.c.l.b16 %v106
    %v589 = vunpack.c.h.b16 %v106
    %v590 = vunpack.c.l.b16 %v107
    %v591 = vunpack.c.h.b16 %v107
    %v592 = vunpack.c.l.b16 %v108
    %v593 = vunpack.c.h.b16 %v108
    %v594 = vunpack.c.l.b16 %v109
    %v595 = vunpack.c.h.b16 %v109
    %v596 = vunpack.c.l.b16 %v110
    %v597 = vunpack.c.h.b16 %v110
    %v598 = vunpack.c.l.b16 %v111
    %v599 = vunpack.c.h.b16 %v111
    %v600 = vunpack.c.l.b16 %v112
    %v601 = vunpack.c.h.b16 %v112
    %v602 = vunpack.c.l.b16 %v113
    %v603 = vunpack.c.h.b16 %v113
    %v604 = vunpack.c.l.b16 %v114
    %v605 = vunpack.c.h.b16 %v114
    %v606 = vunpack.c.l.b16 %v115
    %v607 = vunpack.c.h.b16 %v115
    %v608 = vunpack.c.l.b16 %v116
    %v609 = vunpack.c.h.b16 %v116
    %v610 = vunpack.c.l.b16 %v117
    %v611 = vunpack.c.h.b16 %v117
    %v612 = vunpack.c.l.b16 %v118
    %v613 = vunpack.c.h.b16 %v118
    %v614 = vunpack.c.l.b16 %v119
    %v615 = vunpack.c.h.b16 %v119
    %v616 = vunpack.c.l.b16 %v120
    %v617 = vunpack.c.h.b16 %v120
    %v618 = vunpack.c.l.b16 %v121
    %v619 = vunpack.c.h.b16 %v121
    %v620 = vunpack.c.l.b16 %v122
    %v621 = vunpack.c.h.b16 %v122
    %v622 = vunpack.c.l.b16 %v123
    %v623 = vunpack.c.h.b16 %v123
    %v624 = vunpack.c.l.b16 %v124
    %v625 = vunpack.c.h.b16 %v124
    %v626 = vunpack.c.l.b16 %v125
    %v627 = vunpack.c.h.b16 %v125
    %v628 = vunpack.c.l.b16 %v126
    %v629 = vunpack.c.h.b16 %v126
    %v630 = vunpack.c.l.b16 %v127
    %v631 = vunpack.c.h.b16 %v127
    %v632 = vunpack.c.l.b16 %v128
    %v633 = vunpack.c.h.b16 %v128
    %v634 = vunpack.c.l.b16 %v129
    %v635 = vunpack.c.h.b16 %v129
    %v636 = vunpack.c.l.b16 %v130
    %v637 = vunpack.c.h.b16 %v130
    %v638 = vunpack.c.l.b16 %v131
    %v639 = vunpack.c.h.b16 %v131
    %v640 = vunpack.c.l.b16 %v132
    %v641 = vunpack.c.h.b16 %v132
    %v642 = vunpack.c.l.b16 %v133
    %v643 = vunpack.c.h.b16 %v133
    %v644 = vunpack.c.l.b16 %v134
    %v645 = vunpack.c.h.b16 %v134
    %v646 = vunpack.c.l.b16 %v135
    %v647 = vunpack.c.h.b16 %v135
    %v648 = vunpack.c.l.b16 %v136
    %v649 = vunpack.c.h.b16 %v136
    %v650 = vunpack.c.l.b16 %v137
    %v651 = vunpack.c.h.b16 %v137
    %v652 = vunpack.c.l.b16 %v138
    %v653 = vunpack.c.h.b16 %v138
    %v654 = vunpack.c.l.b16 %v139
    %v655 = vunpack.c.h.b16 %v139
    %v656 = vunpack.c.l.b16 %v140
    %v657 = vunpack.c.h.b16 %v140
    %v658 = vunpack.c.l.b16 %v141
    %v659 = vunpack.c.h.b16 %v141
    %v660 = vunpack.c.l.b16 %v142
    %v661 = vunpack.c.h.b16 %v142
    %v662 = vunpack.c.l.b16 %v143
    %v663 = vunpack.c.h.b16 %v143
    %v664 = vunpack.c.l.b16 %v144
    %v665 = vunpack.c.h.b16 %v144
    %v666 = vunpack.c.l.b16 %v145
    %v667 = vunpack.c.h.b16 %v145
    %v668 = vunpack.c.l.b16 %v146
    %v669 = vunpack.c.h.b16 %v146
    %v670 = vunpack.c.l.b16 %v147
    %v671 = vunpack.c.h.b16 %v147
    %v672 = vunpack.c.l.b16 %v148
    %v673 = vunpack.c.h.b16 %v148
    %v674 = vunpack.c.l.b16 %v149
    %v675 = vunpack.c.h.b16 %v149
    %v676 = vunpack.c.l.b16 %v150
    %v677 = vunpack.c.h.b16 %v150
    %v678 = vunpack.c.l.b16 %v151
    %v679 = vunpack.c.h.b16 %v151
    %v680 = vunpack.c.l.b16 %v152
    %v681 = vunpack.c.h.b16 %v152
    %v682 = vunpack.c.l.b16 %v153
    %v683 = vunpack.c.h.b16 %v153
    %v684 = vunpack.c.l.b16 %v154
    %v685 = vunpack.c.h.b16 %v154
    %v686 = vunpack.c.l.b16 %v155
    %v687 = vunpack.c.h.b16 %v155
    %v688 = vunpack.c.l.b16 %v156
    %v689 = vunpack.c.h.b16 %v156
    %v690 = vunpack.c.l.b16 %v157
    %v691 = vunpack.c.h.b16 %v157
    %v692 = vunpack.c.l.b16 %v158
    %v693 = vunpack.c.h.b16 %v158
    %v694 = vunpack.c.l.b16 %v159
    %v695 = vunpack.c.h.b16 %v159
    %v696 = vunpack.c.l.b16 %v160
    %v697 = vunpack.c.h.b16 %v160
    %v698 = vunpack.c.l.b16 %v161
    %v699 = vunpack.c.h.b16 %v161
    %v700 = vunpack.c.l.b16 %v162
    %v701 = vunpack.c.h.b16 %v162
    %v702 = vunpack.c.l.b16 %v163
    %v703 = vunpack.c.h.b16 %v163
    %v704 = vunpack.c.l.b16 %v164
    %v705 = vunpack.c.h.b16 %v164
    %v706 = vunpack.c.l.b16 %v165
    %v707 = vunpack.c.h.b16 %v165
    %v708 = vunpack.c.l.b16 %v166
    %v709 = vunpack.c.h.b16 %v166
    %v710 = vunpack.c.l.b16 %v167
    %v711 = vunpack.c.h.b16 %v167
    %v712 = vunpack.c.l.b16 %v168
    %v713 = vunpack.c.h.b16 %v168
    %v714 = vunpack.c.l.b16 %v169
    %v715 = vunpack.c.h.b16 %v169
    %v716 = vunpack.c.l.b16 %v170
    %v717 = vunpack.c.h.b16 %v170
    %v718 = vunpack.c.l.b16 %v171
    %v719 = vunpack.c.h.b16 %v171
    %v720 = vunpack.c.l.b16 %v172
    %v721 = vunpack.c.h.b16 %v172
    %v722 = vunpack.c.l.b16 %v173
    %v723 = vunpack.c.h.b16 %v173
    %v724 = vunpack.c.l.b16 %v174
    %v725 = vunpack.c.h.b16 %v174
    %v726 = vunpack.c.l.b16 %v175
    %v727 = vunpack.c.h.b16 %v175
    %v728 = vunpack.c.l.b16 %v176
    %v729 = vunpack.c.h.b16 %v176
    %v730 = vunpack.c.l.b16 %v177
    %v731 = vunpack.c.h.b16 %v177
    %v732 = vunpack.c.l.b16 %v178
    %v733 = vunpack.c.h.b16 %v178
    %v734 = vunpack.c.l.b16 %v179
    %v735 = vunpack.c.h.b16 %v179
    %v736 = vunpack.c.l.b16 %v180
    %v737 = vunpack.c.h.b16 %v180
    %v738 = vunpack.c.l.b16 %v181
    %v739 = vunpack.c.h.b16 %v181
    %v740 = vunpack.c.l.b16 %v182
    %v741 = vunpack.c.h.b16 %v182
    %v742 = vunpack.c.l.b16 %v183
    %v743 = vunpack.c.h.b16 %v183
    %v744 = vunpack.c.l.b16 %v184
    %v745 = vunpack.c.h.b16 %v184
    %v746 = vunpack.c.l.b16 %v185
    %v747 = vunpack.c.h.b16 %v185
    %v748 = vunpack.c.l.b16 %v186
    %v749 = vunpack.c.h.b16 %v186
    %v750 = vunpack.c.l.b16 %v187
    %v751 = vunpack.c.h.b16 %v187
    %v752 = vunpack.c.l.b16 %v188
    %v753 = vunpack.c.h.b16 %v188
    %v754 = vunpack.c.l.b16 %v189
    %v755 = vunpack.c.h.b16 %v189
    %v756 = vunpack.c.l.b16 %v190
    %v757 = vunpack.c.h.b16 %v190
    %v758 = vunpack.c.l.b16 %v191
    %v759 = vunpack.c.h.b16 %v191
    %v760 = vunpack.c.l.b16 %v192
    %v761 = vunpack.c.h.b16 %v192
    %v762 = vunpack.c.l.b16 %v193
    %v763 = vunpack.c.h.b16 %v193
    %v764 = vunpack.c.l.b16 %v194
    %v765 = vunpack.c.h.b16 %v194
    %v766 = vunpack.c.l.b16 %v195
    %v767 = vunpack.c.h.b16 %v195
    %v768 = vunpack.c.l.b16 %v196
    %v769 = vunpack.c.h.b16 %v196
    %v770 = vunpack.c.l.b16 %v197
    %v771 = vunpack.c.h.b16 %v197
    %v772 = vunpack.c.l.b16 %v198
    %v773 = vunpack.c.h.b16 %v198
    %v774 = vunpack.c.l.b16 %v199
    %v775 = vunpack.c.h.b16 %v199
    %v776 = vunpack.c.l.b16 %v200
    %v777 = vunpack.c.h.b16 %v200
    %v778 = vunpack.c.l.b16 %v201
    %v779 = vunpack.c.h.b16 %v201
    %v780 = vunpack.c.l.b16 %v202
    %v781 = vunpack.c.h.b16 %v202
    %v782 = vunpack.c.l.b16 %v203
    %v783 = vunpack.c.h.b16 %v203
    %v784 = vunpack.c.l.b16 %v204
    %v785 = vunpack.c.h.b16 %v204
    %v786 = vunpack.c.l.b16 %v205
    %v787 = vunpack.c.h.b16 %v205
    %v788 = vunpack.c.l.b16 %v206
    %v789 = vunpack.c.h.b16 %v206
    %v790 = vunpack.c.l.b16 %v207
    %v791 = vunpack.c.h.b16 %v207
    %v792 = vunpack.c.l.b16 %v208
    %v793 = vunpack.c.h.b16 %v208
    %v794 = vunpack.c.l.b16 %v209
    %v795 = vunpack.c.h.b16 %v209
    %v796 = vunpack.c.l.b16 %v210
    %v797 = vunpack.c.h.b16 %v210
    %v798 = vunpack.c.l.b16 %v211
    %v799 = vunpack.c.h.b16 %v211
    %v800 = vunpack.c.l.b16 %v212
    %v801 = vunpack.c.h.b16 %v212
    %v802 = vunpack.c.l.b16 %v213
    %v803 = vunpack.c.h.b16 %v213
    %v804 = vunpack.c.l.b16 %v214
    %v805 = vunpack.c.h.b16 %v214
    %v806 = vunpack.c.l.b16 %v215
    %v807 = vunpack.c.h.b16 %v215
    %v808 = vunpack.c.l.b16 %v216
    %v809 = vunpack.c.h.b16 %v216
    %v810 = vunpack.c.l.b16 %v217
    %v811 = vunpack.c.h.b16 %v217
    %v812 = vunpack.c.l.b16 %v218
    %v813 = vunpack.c.h.b16 %v218
    %v814 = vunpack.c.l.b16 %v219
    %v815 = vunpack.c.h.b16 %v219
    %v816 = vunpack.c.l.b16 %v220
    %v817 = vunpack.c.h.b16 %v220
    %v818 = vunpack.c.l.b16 %v221
    %v819 = vunpack.c.h.b16 %v221
    %v820 = vunpack.c.l.b16 %v222
    %v821 = vunpack.c.h.b16 %v222
    %v822 = vunpack.c.l.b16 %v223
    %v823 = vunpack.c.h.b16 %v223
    %v824 = vunpack.c.l.b16 %v224
    %v825 = vunpack.c.h.b16 %v224
    %v826 = vunpack.c.l.b16 %v225
    %v827 = vunpack.c.h.b16 %v225
    %v828 = vunpack.c.l.b16 %v226
    %v829 = vunpack.c.h.b16 %v226
    %v830 = vunpack.c.l.b16 %v227
    %v831 = vunpack.c.h.b16 %v227
    %v832 = vunpack.c.l.b16 %v228
    %v833 = vunpack.c.h.b16 %v228
    %v834 = vunpack.c.l.b16 %v229
    %v835 = vunpack.c.h.b16 %v229
    %v836 = vunpack.c.l.b16 %v230
    %v837 = vunpack.c.h.b16 %v230
    %v838 = vunpack.c.l.b16 %v231
    %v839 = vunpack.c.h.b16 %v231
    %v840 = vunpack.c.l.b16 %v232
    %v841 = vunpack.c.h.b16 %v232
    %v842 = vunpack.c.l.b16 %v233
    %v843 = vunpack.c.h.b16 %v233
    %v844 = vunpack.c.l.b16 %v234
    %v845 = vunpack.c.h.b16 %v234
    %v846 = vunpack.c.l.b16 %v235
    %v847 = vunpack.c.h.b16 %v235
    %v848 = vunpack.c.l.b16 %v236
    %v849 = vunpack.c.h.b16 %v236
    %v850 = vunpack.c.l.b16 %v237
    %v851 = vunpack.c.h.b16 %v237
    %v852 = vunpack.c.l.b16 %v238
    %v853 = vunpack.c.h.b16 %v238
    %v854 = vunpack.c.l.b16 %v239
    %v855 = vunpack.c.h.b16 %v239
    %v856 = vunpack.c.l.b16 %v240
    %v857 = vunpack.c.h.b16 %v240
    %v858 = vunpack.c.l.b16 %v241
    %v859 = vunpack.c.h.b16 %v241
    %v860 = vunpack.c.l.b16 %v242
    %v861 = vunpack.c.h.b16 %v242
    %v862 = vunpack.c.l.b16 %v243
    %v863 = vunpack.c.h.b16 %v243
    %v864 = vunpack.c.l.b16 %v244
    %v865 = vunpack.c.h.b16 %v244
    %v866 = vunpack.c.l.b16 %v245
    %v867 = vunpack.c.h.b16 %v245
    %v868 = vunpack.c.l.b16 %v246
    %v869 = vunpack.c.h.b16 %v246
    %v870 = vunpack.c.l.b16 %v247
    %v871 = vunpack.c.h.b16 %v247
    %v872 = vunpack.c.l.b16 %v248
    %v873 = vunpack.c.h.b16 %v248
    %v874 = vunpack.c.l.b16 %v249
    %v875 = vunpack.c.h.b16 %v249
    %v876 = vunpack.c.l.b16 %v250
    %v877 = vunpack.c.h.b16 %v250
    %v878 = vunpack.c.l.b16 %v251
    %v879 = vunpack.c.h.b16 %v251
    %v880 = vunpack.c.l.b16 %v252
    %v881 = vunpack.c.h.b16 %v252
    %v882 = vunpack.c.l.b16 %v253
    %v883 = vunpack.c.h.b16 %v253
    %v884 = vunpack.c.l.b16 %v254
    %v885 = vunpack.c.h.b16 %v254
    %v886 = vunpack.c.l.b16 %v255
    %v887 = vunpack.c.h.b16 %v255
    %v888 = vunpack.c.l.b16 %v256
    %v889 = vunpack.c.h.b16 %v256
    %v890 = vpack.c.b16 %v502, %v498
    %v891 = vpack.c.b16 %v503, %v499
    %v892 = vpack.c.b16 %v504, %v500
    %v893 = vpack.c.b16 %v505, %v501
    %v894 = vpack.c.b16 %v510, %v506
    %v895 = vpack.c.b16 %v511, %v507
    %v896 = vpack.c.b16 %v512, %v508
    %v897 = vpack.c.b16 %v513, %v509
    %v898 = vpack.c.b16 %v518, %v514
    %v899 = vpack.c.b16 %v519, %v515
    %v900 = vpack.c.b16 %v520, %v516
    %v901 = vpack.c.b16 %v521, %v517
    %v902 = vpack.c.b16 %v526, %v522
    %v903 = vpack.c.b16 %v527, %v523
    %v904 = vpack.c.b16 %v528, %v524
    %v905 = vpack.c.b16 %v529, %v525
    %v906 = vpack.c.b16 %v534, %v530
    %v907 = vpack.c.b16 %v535, %v531
    %v908 = vpack.c.b16 %v536, %v532
    %v909 = vpack.c.b16 %v537, %v533
    %v910 = vpack.c.b16 %v542, %v538
    %v911 = vpack.c.b16 %v543, %v539
    %v912 = vpack.c.b16 %v544, %v540
    %v913 = vpack.c.b16 %v545, %v541
    %v914 = vpack.c.b16 %v550, %v546
    %v915 = vpack.c.b16 %v551, %v547
    %v916 = vpack.c.b16 %v552, %v548
    %v917 = vpack.c.b16 %v553, %v549
    %v918 = vpack.c.b16 %v558, %v554
    %v919 = vpack.c.b16 %v559, %v555
    %v920 = vpack.c.b16 %v560, %v556
    %v921 = vpack.c.b16 %v561, %v557
    %v922 = vpack.c.b16 %v566, %v562
    %v923 = vpack.c.b16 %v567, %v563
    %v924 = vpack.c.b16 %v568, %v564
    %v925 = vpack.c.b16 %v569, %v565
    %v926 = vpack.c.b16 %v574, %v570
    %v927 = vpack.c.b16 %v575, %v571
    %v928 = vpack.c.b16 %v576, %v572
    %v929 = vpack.c.b16 %v577, %v573
    %v930 = vpack.c.b16 %v582, %v578
    %v931 = vpack.c.b16 %v583, %v579
    %v932 = vpack.c.b16 %v584, %v580
    %v933 = vpack.c.b16 %v585, %v581
    %v934 = vpack.c.b16 %v590, %v586
    %v935 = vpack.c.b16 %v591, %v587
    %v936 = vpack.c.b16 %v592, %v588
    %v937 = vpack.c.b16 %v593, %v589
    %v938 = vpack.c.b16 %v598, %v594
    %v939 = vpack.c.b16 %v599, %v595
    %v940 = vpack.c.b16 %v600, %v596
    %v941 = vpack.c.b16 %v601, %v597
    %v942 = vpack.c.b16 %v606, %v602
    %v943 = vpack.c.b16 %v607, %v603
    %v944 = vpack.c.b16 %v608, %v604
    %v945 = vpack.c.b16 %v609, %v605
    %v946 = vpack.c.b16 %v614, %v610
    %v947 = vpack.c.b16 %v615, %v611
    %v948 = vpack.c.b16 %v616, %v612
    %v949 = vpack.c.b16 %v617, %v613
    %v950 = vpack.c.b16 %v622, %v618
    %v951 = vpack.c.b16 %v623, %v619
    %v952 = vpack.c.b16 %v624, %v620
    %v953 = vpack.c.b16 %v625, %v621
    %v954 = vpack.c.b16 %v630, %v626
    %v955 = vpack.c.b16 %v631, %v627
    %v956 = vpack.c.b16 %v632, %v628
    %v957 = vpack.c.b16 %v633, %v629
    %v958 = vpack.c.b16 %v638, %v634
    %v959 = vpack.c.b16 %v639, %v635
    %v960 = vpack.c.b16 %v640, %v636
    %v961 = vpack.c.b16 %v641, %v637
    %v962 = vpack.c.b16 %v646, %v642
    %v963 = vpack.c.b16 %v647, %v643
    %v964 = vpack.c.b16 %v648, %v644
    %v965 = vpack.c.b16 %v649, %v645
    %v966 = vpack.c.b16 %v654, %v650
    %v967 = vpack.c.b16 %v655, %v651
    %v968 = vpack.c.b16 %v656, %v652
    %v969 = vpack.c.b16 %v657, %v653
    %v970 = vpack.c.b16 %v662, %v658
    %v971 = vpack.c.b16 %v663, %v659
    %v972 = vpack.c.b16 %v664, %v660
    %v973 = vpack.c.b16 %v665, %v661
    %v974 = vpack.c.b16 %v670, %v666
    %v975 = vpack.c.b16 %v671, %v667
    %v976 = vpack.c.b16 %v672, %v668
    %v977 = vpack.c.b16 %v673, %v669
    %v978 = vpack.c.b16 %v678, %v674
    %v979 = vpack.c.b16 %v679, %v675
    %v980 = vpack.c.b16 %v680, %v676
    %v981 = vpack.c.b16 %v681, %v677
    %v982 = vpack.c.b16 %v686, %v682
    %v983 = vpack.c.b16 %v687, %v683
    %v984 = vpack.c.b16 %v688, %v684
    %v985 = vpack.c.b16 %v689, %v685
    %v986 = vpack.c.b16 %v694, %v690
    %v987 = vpack.c.b16 %v695, %v691
    %v988 = vpack.c.b16 %v696, %v692
    %v989 = vpack.c.b16 %v697, %v693
    %v990 = vpack.c.b16 %v702, %v698
    %v991 = vpack.c.b16 %v703, %v699
    %v992 = vpack.c.b16 %v704, %v700
    %v993 = vpack.c.b16 %v705, %v701
    %v994 = vpack.c.b16 %v710, %v706
    %v995 = vpack.c.b16 %v711, %v707
    %v996 = vpack.c.b16 %v712, %v708
    %v997 = vpack.c.b16 %v713, %v709
    %v998 = vpack.c.b16 %v718, %v714
    %v999 = vpack.c.b16 %v719, %v715
    %v1000 = vpack.c.b16 %v720, %v716
    %v1001 = vpack.c.b16 %v721, %v717
    %v1002 = vpack.c.b16 %v726, %v722
    %v1003 = vpack.c.b16 %v727, %v723
    %v1004 = vpack.c.b16 %v728, %v724
    %v1005 = vpack.c.b16 %v729, %v725
    %v1006 = vpack.c.b16 %v734, %v730
    %v1007 = vpack.c.b16 %v735, %v731
    %v1008 = vpack.c.b16 %v736, %v732
    %v1009 = vpack.c.b16 %v737, %v733
    %v1010 = vpack.c.b16 %v742, %v738
    %v1011 = vpack.c.b16 %v743, %v739
    %v1012 = vpack.c.b16 %v744, %v740
    %v1013 = vpack.c.b16 %v745, %v741
    %v1014 = vpack.c.b16 %v750, %v746
    %v1015 = vpack.c.b16 %v751, %v747
    %v1016 = vpack.c.b16 %v752, %v748
    %v1017 = vpack.c.b16 %v753, %v749
    %v1018 = vpack.c.b16 %v758, %v754
    %v1019 = vpack.c.b16 %v759, %v755
    %v1020 = vpack.c.b16 %v760, %v756
    %v1021 = vpack.c.b16 %v761, %v757
    %v1022 = vpack.c.b16 %v766, %v762
    %v1023 = vpack.c.b16 %v767, %v763
    %v1024 = vpack.c.b16 %v768, %v764
    %v1025 = vpack.c.b16 %v769, %v765
    %v1026 = vpack.c.b16 %v774, %v770
    %v1027 = vpack.c.b16 %v775, %v771
    %v1028 = vpack.c.b16 %v776, %v772
    %v1029 = vpack.c.b16 %v777, %v773
    %v1030 = vpack.c.b16 %v782, %v778
    %v1031 = vpack.c.b16 %v783, %v779
    %v1032 = vpack.c.b16 %v784, %v780
    %v1033 = vpack.c.b16 %v785, %v781
    %v1034 = vpack.c.b16 %v790, %v786
    %v1035 = vpack.c.b16 %v791, %v787
    %v1036 = vpack.c.b16 %v792, %v788
    %v1037 = vpack.c.b16 %v793, %v789
    %v1038 = vpack.c.b16 %v798, %v794
    %v1039 = vpack.c.b16 %v799, %v795
    %v1040 = vpack.c.b16 %v800, %v796
    %v1041 = vpack.c.b16 %v801, %v797
    %v1042 = vpack.c.b16 %v806, %v802
    %v1043 = vpack.c.b16 %v807, %v803
    %v1044 = vpack.c.b16 %v808, %v804
    %v1045 = vpack.c.b16 %v809, %v805
    %v1046 = vpack.c.b16 %v814, %v810
    %v1047 = vpack.c.b16 %v815, %v811
    %v1048 = vpack.c.b16 %v816, %v812
    %v1049 = vpack.c.b16 %v817, %v813
    %v1050 = vpack.c.b16 %v822, %v818
    %v1051 = vpack.c.b16 %v823, %v819
    %v1052 = vpack.c.b16 %v824, %v820
    %v1053 = vpack.c.b16 %v825, %v821
    %v1054 = vpack.c.b16 %v830, %v826
    %v1055 = vpack.c.b16 %v831, %v827
    %v1056 = vpack.c.b16 %v832, %v828
    %v1057 = vpack.c.b16 %v833, %v829
    %v1058 = vpack.c.b16 %v838, %v834
    %v1059 = vpack.c.b16 %v839, %v835
    %v1060 = vpack.c.b16 %v840, %v836
    %v1061 = vpack.c.b16 %v841, %v837
    %v1062 = vpack.c.b16 %v846, %v842
    %v1063 = vpack.c.b16 %v847, %v843
    %v1064 = vpack.c.b16 %v848, %v844
    %v1065 = vpack.c.b16 %v849, %v845
    %v1066 = vpack.c.b16 %v854, %v850
    %v1067 = vpack.c.b16 %v855, %v851
    %v1068 = vpack.c.b16 %v856, %v852
    %v1069 = vpack.c.b16 %v857, %v853
    %v1070 = vpack.c.b16 %v862, %v858
    %v1071 = vpack.c.b16 %v863, %v859
    %v1072 = vpack.c.b16 %v864, %v860
    %v1073 = vpack.c.b16 %v865, %v861
    %v1074 = vpack.c.b16 %v870, %v866
    %v1075 = vpack.c.b16 %v871, %v867
    %v1076 = vpack.c.b16 %v872, %v868
    %v1077 = vpack.c.b16 %v873, %v869
    %v1078 = vpack.c.b16 %v878, %v874
    %v1079 = vpack.c.b16 %v879, %v875
    %v1080 = vpack.c.b16 %v880, %v876
    %v1081 = vpack.c.b16 %v881, %v877
    %v1082 = vpack.c.b16 %v886, %v882
    %v1083 = vpack.c.b16 %v887, %v883
    %v1084 = vpack.c.b16 %v888, %v884
    %v1085 = vpack.c.b16 %v889, %v885
    %vm1282 = vcmask 130048
    %v1284 = vsel %vm1282, %v295, 0
    %1286 = vmatpush.bf16.msra.mxu0 %v918
    %1287 = vmatpush.bf16.msra.mxu0 %v914
    %1288 = vmatpush.bf16.msra.mxu0 %v910
    %1289 = vmatpush.bf16.msra.mxu0 %v906
    %1290 = vmatpush.bf16.msra.mxu0 %v902
    %1291 = vmatpush.bf16.msra.mxu0 %v898
    %1292 = vmatpush.bf16.msra.mxu0 %v894
    %1293 = vmatpush.bf16.msra.mxu0 %v890
    %1294 = vmatmul.bf16.gmra.mxu0 %v289
    %v1295 = vpop.f32.mrf.mxu0
    %v1296 = vadd.f32 %v259, %v1295
    %v1297 = vpop.f32.mrf.mxu0
    %v1298 = vadd.f32 %v259, %v1297
    %1299 = vdwg.mxu0
    %1300 = vmatpush.bf16.msra.mxu0 %v950
    %1301 = vmatpush.bf16.msra.mxu0 %v946
    %1302 = vmatpush.bf16.msra.mxu0 %v942
    %1303 = vmatpush.bf16.msra.mxu0 %v938
    %1304 = vmatpush.bf16.msra.mxu0 %v934
    %1305 = vmatpush.bf16.msra.mxu0 %v930
    %1306 = vmatpush.bf16.msra.mxu0 %v926
    %1307 = vmatpush.bf16.msra.mxu0 %v922
    %1308 = vmatmul.bf16.gmra.mxu0 %v290
    %v1309 = vpop.f32.mrf.mxu0
    %v1310 = vadd.f32 %v1296, %v1309
    %v1311 = vpop.f32.mrf.mxu0
    %v1312 = vadd.f32 %v1298, %v1311
    %1313 = vdwg.mxu0
    %1314 = vmatpush.bf16.msra.mxu0 %v982
    %1315 = vmatpush.bf16.msra.mxu0 %v978
    %1316 = vmatpush.bf16.msra.mxu0 %v974
    %1317 = vmatpush.bf16.msra.mxu0 %v970
    %1318 = vmatpush.bf16.msra.mxu0 %v966
    %1319 = vmatpush.bf16.msra.mxu0 %v962
    %1320 = vmatpush.bf16.msra.mxu0 %v958
    %1321 = vmatpush.bf16.msra.mxu0 %v954
    %1322 = vmatmul.bf16.gmra.mxu0 %v291
    %v1323 = vpop.f32.mrf.mxu0
    %v1324 = vadd.f32 %v1310, %v1323
    %v1325 = vpop.f32.mrf.mxu0
    %v1326 = vadd.f32 %v1312, %v1325
    %1327 = vdwg.mxu0
    %1328 = vmatpush.bf16.msra.mxu0 %v1014
    %1329 = vmatpush.bf16.msra.mxu0 %v1010
    %1330 = vmatpush.bf16.msra.mxu0 %v1006
    %1331 = vmatpush.bf16.msra.mxu0 %v1002
    %1332 = vmatpush.bf16.msra.mxu0 %v998
    %1333 = vmatpush.bf16.msra.mxu0 %v994
    %1334 = vmatpush.bf16.msra.mxu0 %v990
    %1335 = vmatpush.bf16.msra.mxu0 %v986
    %1336 = vmatmul.bf16.gmra.mxu0 %v292
    %v1337 = vpop.f32.mrf.mxu0
    %v1338 = vadd.f32 %v1324, %v1337
    %v1339 = vpop.f32.mrf.mxu0
    %v1340 = vadd.f32 %v1326, %v1339
    %1341 = vdwg.mxu0
    %1342 = vmatpush.bf16.msra.mxu0 %v1046
    %1343 = vmatpush.bf16.msra.mxu0 %v1042
    %1344 = vmatpush.bf16.msra.mxu0 %v1038
    %1345 = vmatpush.bf16.msra.mxu0 %v1034
    %1346 = vmatpush.bf16.msra.mxu0 %v1030
    %1347 = vmatpush.bf16.msra.mxu0 %v1026
    %1348 = vmatpush.bf16.msra.mxu0 %v1022
    %1349 = vmatpush.bf16.msra.mxu0 %v1018
    %1350 = vmatmul.bf16.gmra.mxu0 %v293
    %v1351 = vpop.f32.mrf.mxu0
    %v1352 = vadd.f32 %v1338, %v1351
    %v1353 = vpop.f32.mrf.mxu0
    %v1354 = vadd.f32 %v1340, %v1353
    %1355 = vdwg.mxu0
    %1356 = vmatpush.bf16.msra.mxu0 %v1078
    %1357 = vmatpush.bf16.msra.mxu0 %v1074
    %1358 = vmatpush.bf16.msra.mxu0 %v1070
    %1359 = vmatpush.bf16.msra.mxu0 %v1066
    %1360 = vmatpush.bf16.msra.mxu0 %v1062
    %1361 = vmatpush.bf16.msra.mxu0 %v1058
    %1362 = vmatpush.bf16.msra.mxu0 %v1054
    %1363 = vmatpush.bf16.msra.mxu0 %v1050
    %1364 = vmatmul.bf16.gmra.mxu0 %v294
    %v1365 = vpop.f32.mrf.mxu0
    %v1366 = vadd.f32 %v1352, %v1365
    %v1367 = vpop.f32.mrf.mxu0
    %v1368 = vadd.f32 %v1354, %v1367
    %1369 = vdwg.mxu0
    %1370 = vmatpush.bf16.msra.mxu0 0
    %1371 = vmatpush.bf16.msra.mxu0 0
    %1372 = vmatpush.bf16.msra.mxu0 0
    %1373 = vmatpush.bf16.msra.mxu0 0
    %1374 = vmatpush.bf16.msra.mxu0 0
    %1375 = vmatpush.bf16.msra.mxu0 0
    %1376 = vmatpush.bf16.msra.mxu0 0
    %1377 = vmatpush.bf16.msra.mxu0 %v1082
    %1378 = vmatmul.bf16.gmra.mxu0 %v1284
    %v1379 = vpop.f32.mrf.mxu0
    %v1380 = vadd.f32 %v1366, %v1379
    %v1381 = vpop.f32.mrf.mxu0
    %v1382 = vadd.f32 %v1368, %v1381
    %1383 = vdwg.mxu0
    %1384 = vmatpush.bf16.msra.mxu0 %v919
    %1385 = vmatpush.bf16.msra.mxu0 %v915
    %1386 = vmatpush.bf16.msra.mxu0 %v911
    %1387 = vmatpush.bf16.msra.mxu0 %v907
    %1388 = vmatpush.bf16.msra.mxu0 %v903
    %1389 = vmatpush.bf16.msra.mxu0 %v899
    %1390 = vmatpush.bf16.msra.mxu0 %v895
    %1391 = vmatpush.bf16.msra.mxu0 %v891
    %1392 = vmatmul.bf16.gmra.mxu0 %v289
    %v1393 = vpop.f32.mrf.mxu0
    %v1394 = vadd.f32 %v260, %v1393
    %v1395 = vpop.f32.mrf.mxu0
    %v1396 = vadd.f32 %v260, %v1395
    %1397 = vdwg.mxu0
    %1398 = vmatpush.bf16.msra.mxu0 %v951
    %1399 = vmatpush.bf16.msra.mxu0 %v947
    %1400 = vmatpush.bf16.msra.mxu0 %v943
    %1401 = vmatpush.bf16.msra.mxu0 %v939
    %1402 = vmatpush.bf16.msra.mxu0 %v935
    %1403 = vmatpush.bf16.msra.mxu0 %v931
    %1404 = vmatpush.bf16.msra.mxu0 %v927
    %1405 = vmatpush.bf16.msra.mxu0 %v923
    %1406 = vmatmul.bf16.gmra.mxu0 %v290
    %v1407 = vpop.f32.mrf.mxu0
    %v1408 = vadd.f32 %v1394, %v1407
    %v1409 = vpop.f32.mrf.mxu0
    %v1410 = vadd.f32 %v1396, %v1409
    %1411 = vdwg.mxu0
    %1412 = vmatpush.bf16.msra.mxu0 %v983
    %1413 = vmatpush.bf16.msra.mxu0 %v979
    %1414 = vmatpush.bf16.msra.mxu0 %v975
    %1415 = vmatpush.bf16.msra.mxu0 %v971
    %1416 = vmatpush.bf16.msra.mxu0 %v967
    %1417 = vmatpush.bf16.msra.mxu0 %v963
    %1418 = vmatpush.bf16.msra.mxu0 %v959
    %1419 = vmatpush.bf16.msra.mxu0 %v955
    %1420 = vmatmul.bf16.gmra.mxu0 %v291
    %v1421 = vpop.f32.mrf.mxu0
    %v1422 = vadd.f32 %v1408, %v1421
    %v1423 = vpop.f32.mrf.mxu0
    %v1424 = vadd.f32 %v1410, %v1423
    %1425 = vdwg.mxu0
    %1426 = vmatpush.bf16.msra.mxu0 %v1015
    %1427 = vmatpush.bf16.msra.mxu0 %v1011
    %1428 = vmatpush.bf16.msra.mxu0 %v1007
    %1429 = vmatpush.bf16.msra.mxu0 %v1003
    %1430 = vmatpush.bf16.msra.mxu0 %v999
    %1431 = vmatpush.bf16.msra.mxu0 %v995
    %1432 = vmatpush.bf16.msra.mxu0 %v991
    %1433 = vmatpush.bf16.msra.mxu0 %v987
    %1434 = vmatmul.bf16.gmra.mxu0 %v292
    %v1435 = vpop.f32.mrf.mxu0
    %v1436 = vadd.f32 %v1422, %v1435
    %v1437 = vpop.f32.mrf.mxu0
    %v1438 = vadd.f32 %v1424, %v1437
    %1439 = vdwg.mxu0
    %1440 = vmatpush.bf16.msra.mxu0 %v1047
    %1441 = vmatpush.bf16.msra.mxu0 %v1043
    %1442 = vmatpush.bf16.msra.mxu0 %v1039
    %1443 = vmatpush.bf16.msra.mxu0 %v1035
    %1444 = vmatpush.bf16.msra.mxu0 %v1031
    %1445 = vmatpush.bf16.msra.mxu0 %v1027
    %1446 = vmatpush.bf16.msra.mxu0 %v1023
    %1447 = vmatpush.bf16.msra.mxu0 %v1019
    %1448 = vmatmul.bf16.gmra.mxu0 %v293
    %v1449 = vpop.f32.mrf.mxu0
    %v1450 = vadd.f32 %v1436, %v1449
    %v1451 = vpop.f32.mrf.mxu0
    %v1452 = vadd.f32 %v1438, %v1451
    %1453 = vdwg.mxu0
    %1454 = vmatpush.bf16.msra.mxu0 %v1079
    %1455 = vmatpush.bf16.msra.mxu0 %v1075
    %1456 = vmatpush.bf16.msra.mxu0 %v1071
    %1457 = vmatpush.bf16.msra.mxu0 %v1067
    %1458 = vmatpush.bf16.msra.mxu0 %v1063
    %1459 = vmatpush.bf16.msra.mxu0 %v1059
    %1460 = vmatpush.bf16.msra.mxu0 %v1055
    %1461 = vmatpush.bf16.msra.mxu0 %v1051
    %1462 = vmatmul.bf16.gmra.mxu0 %v294
    %v1463 = vpop.f32.mrf.mxu0
    %v1464 = vadd.f32 %v1450, %v1463
    %v1465 = vpop.f32.mrf.mxu0
    %v1466 = vadd.f32 %v1452, %v1465
    %1467 = vdwg.mxu0
    %1468 = vmatpush.bf16.msra.mxu0 0
    %1469 = vmatpush.bf16.msra.mxu0 0
    %1470 = vmatpush.bf16.msra.mxu0 0
    %1471 = vmatpush.bf16.msra.mxu0 0
    %1472 = vmatpush.bf16.msra.mxu0 0
    %1473 = vmatpush.bf16.msra.mxu0 0
    %1474 = vmatpush.bf16.msra.mxu0 0
    %1475 = vmatpush.bf16.msra.mxu0 %v1083
    %1476 = vmatmul.bf16.gmra.mxu0 %v1284
    %v1477 = vpop.f32.mrf.mxu0
    %v1478 = vadd.f32 %v1464, %v1477
    %v1479 = vpop.f32.mrf.mxu0
    %v1480 = vadd.f32 %v1466, %v1479
    %1481 = vdwg.mxu0
    %1482 = vmatpush.bf16.msra.mxu0 %v920
    %1483 = vmatpush.bf16.msra.mxu0 %v916
    %1484 = vmatpush.bf16.msra.mxu0 %v912
    %1485 = vmatpush.bf16.msra.mxu0 %v908
    %1486 = vmatpush.bf16.msra.mxu0 %v904
    %1487 = vmatpush.bf16.msra.mxu0 %v900
    %1488 = vmatpush.bf16.msra.mxu0 %v896
    %1489 = vmatpush.bf16.msra.mxu0 %v892
    %1490 = vmatmul.bf16.gmra.mxu0 %v289
    %v1491 = vpop.f32.mrf.mxu0
    %v1492 = vadd.f32 %v261, %v1491
    %v1493 = vpop.f32.mrf.mxu0
    %v1494 = vadd.f32 %v261, %v1493
    %1495 = vdwg.mxu0
    %1496 = vmatpush.bf16.msra.mxu0 %v952
    %1497 = vmatpush.bf16.msra.mxu0 %v948
    %1498 = vmatpush.bf16.msra.mxu0 %v944
    %1499 = vmatpush.bf16.msra.mxu0 %v940
    %1500 = vmatpush.bf16.msra.mxu0 %v936
    %1501 = vmatpush.bf16.msra.mxu0 %v932
    %1502 = vmatpush.bf16.msra.mxu0 %v928
    %1503 = vmatpush.bf16.msra.mxu0 %v924
    %1504 = vmatmul.bf16.gmra.mxu0 %v290
    %v1505 = vpop.f32.mrf.mxu0
    %v1506 = vadd.f32 %v1492, %v1505
    %v1507 = vpop.f32.mrf.mxu0
    %v1508 = vadd.f32 %v1494, %v1507
    %1509 = vdwg.mxu0
    %1510 = vmatpush.bf16.msra.mxu0 %v984
    %1511 = vmatpush.bf16.msra.mxu0 %v980
    %1512 = vmatpush.bf16.msra.mxu0 %v976
    %1513 = vmatpush.bf16.msra.mxu0 %v972
    %1514 = vmatpush.bf16.msra.mxu0 %v968
    %1515 = vmatpush.bf16.msra.mxu0 %v964
    %1516 = vmatpush.bf16.msra.mxu0 %v960
    %1517 = vmatpush.bf16.msra.mxu0 %v956
    %1518 = vmatmul.bf16.gmra.mxu0 %v291
    %v1519 = vpop.f32.mrf.mxu0
    %v1520 = vadd.f32 %v1506, %v1519
    %v1521 = vpop.f32.mrf.mxu0
    %v1522 = vadd.f32 %v1508, %v1521
    %1523 = vdwg.mxu0
    %1524 = vmatpush.bf16.msra.mxu0 %v1016
    %1525 = vmatpush.bf16.msra.mxu0 %v1012
    %1526 = vmatpush.bf16.msra.mxu0 %v1008
    %1527 = vmatpush.bf16.msra.mxu0 %v1004
    %1528 = vmatpush.bf16.msra.mxu0 %v1000
    %1529 = vmatpush.bf16.msra.mxu0 %v996
    %1530 = vmatpush.bf16.msra.mxu0 %v992
    %1531 = vmatpush.bf16.msra.mxu0 %v988
    %1532 = vmatmul.bf16.gmra.mxu0 %v292
    %v1533 = vpop.f32.mrf.mxu0
    %v1534 = vadd.f32 %v1520, %v1533
    %v1535 = vpop.f32.mrf.mxu0
    %v1536 = vadd.f32 %v1522, %v1535
    %1537 = vdwg.mxu0
    %1538 = vmatpush.bf16.msra.mxu0 %v1048
    %1539 = vmatpush.bf16.msra.mxu0 %v1044
    %1540 = vmatpush.bf16.msra.mxu0 %v1040
    %1541 = vmatpush.bf16.msra.mxu0 %v1036
    %1542 = vmatpush.bf16.msra.mxu0 %v1032
    %1543 = vmatpush.bf16.msra.mxu0 %v1028
    %1544 = vmatpush.bf16.msra.mxu0 %v1024
    %1545 = vmatpush.bf16.msra.mxu0 %v1020
    %1546 = vmatmul.bf16.gmra.mxu0 %v293
    %v1547 = vpop.f32.mrf.mxu0
    %v1548 = vadd.f32 %v1534, %v1547
    %v1549 = vpop.f32.mrf.mxu0
    %v1550 = vadd.f32 %v1536, %v1549
    %1551 = vdwg.mxu0
    %1552 = vmatpush.bf16.msra.mxu0 %v1080
    %1553 = vmatpush.bf16.msra.mxu0 %v1076
    %1554 = vmatpush.bf16.msra.mxu0 %v1072
    %1555 = vmatpush.bf16.msra.mxu0 %v1068
    %1556 = vmatpush.bf16.msra.mxu0 %v1064
    %1557 = vmatpush.bf16.msra.mxu0 %v1060
    %1558 = vmatpush.bf16.msra.mxu0 %v1056
    %1559 = vmatpush.bf16.msra.mxu0 %v1052
    %1560 = vmatmul.bf16.gmra.mxu0 %v294
    %v1561 = vpop.f32.mrf.mxu0
    %v1562 = vadd.f32 %v1548, %v1561
    %v1563 = vpop.f32.mrf.mxu0
    %v1564 = vadd.f32 %v1550, %v1563
    %1565 = vdwg.mxu0
    %1566 = vmatpush.bf16.msra.mxu0 0
    %1567 = vmatpush.bf16.msra.mxu0 0
    %1568 = vmatpush.bf16.msra.mxu0 0
    %1569 = vmatpush.bf16.msra.mxu0 0
    %1570 = vmatpush.bf16.msra.mxu0 0
    %1571 = vmatpush.bf16.msra.mxu0 0
    %1572 = vmatpush.bf16.msra.mxu0 0
    %1573 = vmatpush.bf16.msra.mxu0 %v1084
    %1574 = vmatmul.bf16.gmra.mxu0 %v1284
    %v1575 = vpop.f32.mrf.mxu0
    %v1576 = vadd.f32 %v1562, %v1575
    %v1577 = vpop.f32.mrf.mxu0
    %v1578 = vadd.f32 %v1564, %v1577
    %1579 = vdwg.mxu0
    %1580 = vmatpush.bf16.msra.mxu0 %v921
    %1581 = vmatpush.bf16.msra.mxu0 %v917
    %1582 = vmatpush.bf16.msra.mxu0 %v913
    %1583 = vmatpush.bf16.msra.mxu0 %v909
    %1584 = vmatpush.bf16.msra.mxu0 %v905
    %1585 = vmatpush.bf16.msra.mxu0 %v901
    %1586 = vmatpush.bf16.msra.mxu0 %v897
    %1587 = vmatpush.bf16.msra.mxu0 %v893
    %1588 = vmatmul.bf16.gmra.mxu0 %v289
    %v1589 = vpop.f32.mrf.mxu0
    %v1590 = vadd.f32 %v262, %v1589
    %v1591 = vpop.f32.mrf.mxu0
    %v1592 = vadd.f32 %v262, %v1591
    %1593 = vdwg.mxu0
    %1594 = vmatpush.bf16.msra.mxu0 %v953
    %1595 = vmatpush.bf16.msra.mxu0 %v949
    %1596 = vmatpush.bf16.msra.mxu0 %v945
    %1597 = vmatpush.bf16.msra.mxu0 %v941
    %1598 = vmatpush.bf16.msra.mxu0 %v937
    %1599 = vmatpush.bf16.msra.mxu0 %v933
    %1600 = vmatpush.bf16.msra.mxu0 %v929
    %1601 = vmatpush.bf16.msra.mxu0 %v925
    %1602 = vmatmul.bf16.gmra.mxu0 %v290
    %v1603 = vpop.f32.mrf.mxu0
    %v1604 = vadd.f32 %v1590, %v1603
    %v1605 = vpop.f32.mrf.mxu0
    %v1606 = vadd.f32 %v1592, %v1605
    %1607 = vdwg.mxu0
    %1608 = vmatpush.bf16.msra.mxu0 %v985
    %1609 = vmatpush.bf16.msra.mxu0 %v981
    %1610 = vmatpush.bf16.msra.mxu0 %v977
    %1611 = vmatpush.bf16.msra.mxu0 %v973
    %1612 = vmatpush.bf16.msra.mxu0 %v969
    %1613 = vmatpush.bf16.msra.mxu0 %v965
    %1614 = vmatpush.bf16.msra.mxu0 %v961
    %1615 = vmatpush.bf16.msra.mxu0 %v957
    %1616 = vmatmul.bf16.gmra.mxu0 %v291
    %v1617 = vpop.f32.mrf.mxu0
    %v1618 = vadd.f32 %v1604, %v1617
    %v1619 = vpop.f32.mrf.mxu0
    %v1620 = vadd.f32 %v1606, %v1619
    %1621 = vdwg.mxu0
    %1622 = vmatpush.bf16.msra.mxu0 %v1017
    %1623 = vmatpush.bf16.msra.mxu0 %v1013
    %1624 = vmatpush.bf16.msra.mxu0 %v1009
    %1625 = vmatpush.bf16.msra.mxu0 %v1005
    %1626 = vmatpush.bf16.msra.mxu0 %v1001
    %1627 = vmatpush.bf16.msra.mxu0 %v997
    %1628 = vmatpush.bf16.msra.mxu0 %v993
    %1629 = vmatpush.bf16.msra.mxu0 %v989
    %1630 = vmatmul.bf16.gmra.mxu0 %v292
    %v1631 = vpop.f32.mrf.mxu0
    %v1632 = vadd.f32 %v1618, %v1631
    %v1633 = vpop.f32.mrf.mxu0
    %v1634 = vadd.f32 %v1620, %v1633
    %1635 = vdwg.mxu0
    %1636 = vmatpush.bf16.msra.mxu0 %v1049
    %1637 = vmatpush.bf16.msra.mxu0 %v1045
    %1638 = vmatpush.bf16.msra.mxu0 %v1041
    %1639 = vmatpush.bf16.msra.mxu0 %v1037
    %1640 = vmatpush.bf16.msra.mxu0 %v1033
    %1641 = vmatpush.bf16.msra.mxu0 %v1029
    %1642 = vmatpush.bf16.msra.mxu0 %v1025
    %1643 = vmatpush.bf16.msra.mxu0 %v1021
    %1644 = vmatmul.bf16.gmra.mxu0 %v293
    %v1645 = vpop.f32.mrf.mxu0
    %v1646 = vadd.f32 %v1632, %v1645
    %v1647 = vpop.f32.mrf.mxu0
    %v1648 = vadd.f32 %v1634, %v1647
    %1649 = vdwg.mxu0
    %1650 = vmatpush.bf16.msra.mxu0 %v1081
    %1651 = vmatpush.bf16.msra.mxu0 %v1077
    %1652 = vmatpush.bf16.msra.mxu0 %v1073
    %1653 = vmatpush.bf16.msra.mxu0 %v1069
    %1654 = vmatpush.bf16.msra.mxu0 %v1065
    %1655 = vmatpush.bf16.msra.mxu0 %v1061
    %1656 = vmatpush.bf16.msra.mxu0 %v1057
    %1657 = vmatpush.bf16.msra.mxu0 %v1053
    %1658 = vmatmul.bf16.gmra.mxu0 %v294
    %v1659 = vpop.f32.mrf.mxu0
    %v1660 = vadd.f32 %v1646, %v1659
    %v1661 = vpop.f32.mrf.mxu0
    %v1662 = vadd.f32 %v1648, %v1661
    %1663 = vdwg.mxu0
    %1664 = vmatpush.bf16.msra.mxu0 0
    %1665 = vmatpush.bf16.msra.mxu0 0
    %1666 = vmatpush.bf16.msra.mxu0 0
    %1667 = vmatpush.bf16.msra.mxu0 0
    %1668 = vmatpush.bf16.msra.mxu0 0
    %1669 = vmatpush.bf16.msra.mxu0 0
    %1670 = vmatpush.bf16.msra.mxu0 0
    %1671 = vmatpush.bf16.msra.mxu0 %v1085
    %1672 = vmatmul.bf16.gmra.mxu0 %v1284
    %v1673 = vpop.f32.mrf.mxu0
    %v1674 = vadd.f32 %v1660, %v1673
    %v1675 = vpop.f32.mrf.mxu0
    %v1676 = vadd.f32 %v1662, %v1675
    %1677 = vdwg.mxu0
    %v1678 = vmax.f32 %v1380, 0.0
    %v1679 = vmax.f32 %v1478, 0.0
    %v1680 = vmax.f32 %v1576, 0.0
    %v1681 = vmax.f32 %v1674, 0.0
    %v1682 = vmax.f32 %v1382, 0.0
    %v1683 = vmax.f32 %v1480, 0.0
    %v1684 = vmax.f32 %v1578, 0.0
    %v1685 = vmax.f32 %v1676, 0.0
    %v1686 = vpack.c.bf16 %v1682, %v1678
    %v1687 = vpack.c.bf16 %v1683, %v1679
    %v1688 = vpack.c.bf16 %v1684, %v1680
    %v1689 = vpack.c.bf16 %v1685, %v1681
    %v1690 = vld [vmem:[#allocation4] sm:$0xf]
    %v1691 = vld [vmem:[#allocation4 + $0x4] sm:$0xf]
    %v1692 = vld [vmem:[#allocation4 + $0x8] sm:$0xf]
    %v1693 = vld [vmem:[#allocation4 + $0xc] sm:$0xf]
    %v1694 = vld [vmem:[#allocation4 + $0x10] sm:$0xf]
    %v1695 = vld [vmem:[#allocation4 + $0x14] sm:$0xf]
    %v1696 = vld [vmem:[#allocation4 + $0x18] sm:$0xf]
    %v1697 = vld [vmem:[#allocation4 + $0x1c] sm:$0xf]
    %v1698 = vld [vmem:[#allocation4 + $0x20] sm:$0xf]
    %v1699 = vld [vmem:[#allocation4 + $0x24] sm:$0xf]
    %v1700 = vld [vmem:[#allocation4 + $0x28] sm:$0xf]
    %v1701 = vld [vmem:[#allocation4 + $0x2c] sm:$0xf]
    %v1702 = vld [vmem:[#allocation4 + $0x30] sm:$0xf]
    %v1703 = vld [vmem:[#allocation4 + $0x34] sm:$0xf]
    %v1704 = vld [vmem:[#allocation4 + $0x38] sm:$0xf]
    %v1705 = vld [vmem:[#allocation4 + $0x3c] sm:$0xf]
    %v1706 = vld [vmem:[#allocation4 + $0x40] sm:$0xf]
    %v1707 = vld [vmem:[#allocation4 + $0x44] sm:$0xf]
    %v1708 = vld [vmem:[#allocation4 + $0x48] sm:$0xf]
    %v1709 = vld [vmem:[#allocation4 + $0x4c] sm:$0xf]
    %v1710 = vld [vmem:[#allocation4 + $0x50] sm:$0xf]
    %v1711 = vld [vmem:[#allocation4 + $0x54] sm:$0xf]
    %v1712 = vld [vmem:[#allocation4 + $0x58] sm:$0xf]
    %v1713 = vld [vmem:[#allocation4 + $0x5c] sm:$0xf]
    %v1714 = vld [vmem:[#allocation4 + $0x60] sm:$0xf]
    %v1715 = vld [vmem:[#allocation4 + $0x64] sm:$0xf]
    %v1716 = vld [vmem:[#allocation4 + $0x68] sm:$0xf]
    %v1717 = vld [vmem:[#allocation4 + $0x6c] sm:$0xf]
    %v1718 = vld [vmem:[#allocation4 + $0x70] sm:$0xf]
    %v1719 = vld [vmem:[#allocation4 + $0x74] sm:$0xf]
    %v1720 = vld [vmem:[#allocation4 + $0x78] sm:$0xf]
    %v1721 = vld [vmem:[#allocation4 + $0x7c] sm:$0xf]
    %v1722 = vld [vmem:[#allocation4 + $0x80] sm:$0xf]
    %v1723 = vld [vmem:[#allocation4 + $0x84] sm:$0xf]
    %v1724 = vld [vmem:[#allocation4 + $0x88] sm:$0xf]
    %v1725 = vld [vmem:[#allocation4 + $0x8c] sm:$0xf]
    %v1726 = vld [vmem:[#allocation4 + $0x90] sm:$0xf]
    %v1727 = vld [vmem:[#allocation4 + $0x94] sm:$0xf]
    %v1728 = vld [vmem:[#allocation4 + $0x98] sm:$0xf]
    %v1729 = vld [vmem:[#allocation4 + $0x9c] sm:$0xf]
    %v1730 = vld [vmem:[#allocation4 + $0xa0] sm:$0xf]
    %v1731 = vld [vmem:[#allocation4 + $0xa4] sm:$0xf]
    %v1732 = vld [vmem:[#allocation4 + $0xa8] sm:$0xf]
    %v1733 = vld [vmem:[#allocation4 + $0xac] sm:$0xf]
    %v1734 = vld [vmem:[#allocation4 + $0xb0] sm:$0xf]
    %v1735 = vld [vmem:[#allocation4 + $0xb4] sm:$0xf]
    %v1736 = vld [vmem:[#allocation4 + $0xb8] sm:$0xf]
    %v1737 = vld [vmem:[#allocation4 + $0xbc] sm:$0xf]
    %v1738 = vld [vmem:[#allocation4 + $0xc0] sm:$0xf]
    %v1739 = vld [vmem:[#allocation4 + $0xc4] sm:$0xf]
    %v1740 = vld [vmem:[#allocation4 + $0xc8] sm:$0xf]
    %v1741 = vld [vmem:[#allocation4 + $0xcc] sm:$0xf]
    %v1742 = vld [vmem:[#allocation4 + $0xd0] sm:$0xf]
    %v1743 = vld [vmem:[#allocation4 + $0xd4] sm:$0xf]
    %v1744 = vld [vmem:[#allocation4 + $0xd8] sm:$0xf]
    %v1745 = vld [vmem:[#allocation4 + $0xdc] sm:$0xf]
    %v1746 = vld [vmem:[#allocation4 + $0xe0] sm:$0xf]
    %v1747 = vld [vmem:[#allocation4 + $0xe4] sm:$0xf]
    %v1748 = vld [vmem:[#allocation4 + $0xe8] sm:$0xf]
    %v1749 = vld [vmem:[#allocation4 + $0xec] sm:$0xf]
    %v1750 = vld [vmem:[#allocation4 + $0xf0] sm:$0xf]
    %v1751 = vld [vmem:[#allocation4 + $0xf4] sm:$0xf]
    %v1752 = vld [vmem:[#allocation4 + $0xf8] sm:$0xf]
    %v1753 = vld [vmem:[#allocation4 + $0xfc] sm:$0xf]
    %v1754 = vld [vmem:[%s4] sm:$0x1]
    %v1756 = vperm.slane %v1754, 0
    %v1822 = vunpack.c.l.b16 %v1690
    %v1823 = vunpack.c.l.b16 %v1691
    %v1824 = vunpack.c.l.b16 %v1692
    %v1825 = vunpack.c.l.b16 %v1693
    %v1826 = vunpack.c.l.b16 %v1694
    %v1827 = vunpack.c.l.b16 %v1695
    %v1828 = vunpack.c.l.b16 %v1696
    %v1829 = vunpack.c.l.b16 %v1697
    %v1830 = vunpack.c.l.b16 %v1698
    %v1831 = vunpack.c.l.b16 %v1699
    %v1832 = vunpack.c.l.b16 %v1700
    %v1833 = vunpack.c.l.b16 %v1701
    %v1834 = vunpack.c.l.b16 %v1702
    %v1835 = vunpack.c.l.b16 %v1703
    %v1836 = vunpack.c.l.b16 %v1704
    %v1837 = vunpack.c.l.b16 %v1705
    %v1838 = vunpack.c.l.b16 %v1706
    %v1839 = vunpack.c.l.b16 %v1707
    %v1840 = vunpack.c.l.b16 %v1708
    %v1841 = vunpack.c.l.b16 %v1709
    %v1842 = vunpack.c.l.b16 %v1710
    %v1843 = vunpack.c.l.b16 %v1711
    %v1844 = vunpack.c.l.b16 %v1712
    %v1845 = vunpack.c.l.b16 %v1713
    %v1846 = vunpack.c.l.b16 %v1714
    %v1847 = vunpack.c.l.b16 %v1715
    %v1848 = vunpack.c.l.b16 %v1716
    %v1849 = vunpack.c.l.b16 %v1717
    %v1850 = vunpack.c.l.b16 %v1718
    %v1851 = vunpack.c.l.b16 %v1719
    %v1852 = vunpack.c.l.b16 %v1720
    %v1853 = vunpack.c.l.b16 %v1721
    %v1854 = vunpack.c.l.b16 %v1722
    %v1855 = vunpack.c.l.b16 %v1723
    %v1856 = vunpack.c.l.b16 %v1724
    %v1857 = vunpack.c.l.b16 %v1725
    %v1858 = vunpack.c.l.b16 %v1726
    %v1859 = vunpack.c.l.b16 %v1727
    %v1860 = vunpack.c.l.b16 %v1728
    %v1861 = vunpack.c.l.b16 %v1729
    %v1862 = vunpack.c.l.b16 %v1730
    %v1863 = vunpack.c.l.b16 %v1731
    %v1864 = vunpack.c.l.b16 %v1732
    %v1865 = vunpack.c.l.b16 %v1733
    %v1866 = vunpack.c.l.b16 %v1734
    %v1867 = vunpack.c.l.b16 %v1735
    %v1868 = vunpack.c.l.b16 %v1736
    %v1869 = vunpack.c.l.b16 %v1737
    %v1870 = vunpack.c.l.b16 %v1738
    %v1871 = vunpack.c.l.b16 %v1739
    %v1872 = vunpack.c.l.b16 %v1740
    %v1873 = vunpack.c.l.b16 %v1741
    %v1874 = vunpack.c.l.b16 %v1742
    %v1875 = vunpack.c.l.b16 %v1743
    %v1876 = vunpack.c.l.b16 %v1744
    %v1877 = vunpack.c.l.b16 %v1745
    %v1878 = vunpack.c.l.b16 %v1746
    %v1879 = vunpack.c.l.b16 %v1747
    %v1880 = vunpack.c.l.b16 %v1748
    %v1881 = vunpack.c.l.b16 %v1749
    %v1882 = vunpack.c.l.b16 %v1750
    %v1883 = vunpack.c.l.b16 %v1751
    %v1884 = vunpack.c.l.b16 %v1752
    %v1885 = vunpack.c.l.b16 %v1753
    %v1886 = vpack.c.b16 %v1823, %v1822
    %v1887 = vpack.c.b16 %v1825, %v1824
    %v1888 = vpack.c.b16 %v1827, %v1826
    %v1889 = vpack.c.b16 %v1829, %v1828
    %v1890 = vpack.c.b16 %v1831, %v1830
    %v1891 = vpack.c.b16 %v1833, %v1832
    %v1892 = vpack.c.b16 %v1835, %v1834
    %v1893 = vpack.c.b16 %v1837, %v1836
    %v1894 = vpack.c.b16 %v1839, %v1838
    %v1895 = vpack.c.b16 %v1841, %v1840
    %v1896 = vpack.c.b16 %v1843, %v1842
    %v1897 = vpack.c.b16 %v1845, %v1844
    %v1898 = vpack.c.b16 %v1847, %v1846
    %v1899 = vpack.c.b16 %v1849, %v1848
    %v1900 = vpack.c.b16 %v1851, %v1850
    %v1901 = vpack.c.b16 %v1853, %v1852
    %v1902 = vpack.c.b16 %v1855, %v1854
    %v1903 = vpack.c.b16 %v1857, %v1856
    %v1904 = vpack.c.b16 %v1859, %v1858
    %v1905 = vpack.c.b16 %v1861, %v1860
    %v1906 = vpack.c.b16 %v1863, %v1862
    %v1907 = vpack.c.b16 %v1865, %v1864
    %v1908 = vpack.c.b16 %v1867, %v1866
    %v1909 = vpack.c.b16 %v1869, %v1868
    %v1910 = vpack.c.b16 %v1871, %v1870
    %v1911 = vpack.c.b16 %v1873, %v1872
    %v1912 = vpack.c.b16 %v1875, %v1874
    %v1913 = vpack.c.b16 %v1877, %v1876
    %v1914 = vpack.c.b16 %v1879, %v1878
    %v1915 = vpack.c.b16 %v1881, %v1880
    %v1916 = vpack.c.b16 %v1883, %v1882
    %v1917 = vpack.c.b16 %v1885, %v1884
    %1950 = vmatpush.bf16.msra.mxu0 %v1893
    %1951 = vmatpush.bf16.msra.mxu0 %v1892
    %1952 = vmatpush.bf16.msra.mxu0 %v1891
    %1953 = vmatpush.bf16.msra.mxu0 %v1890
    %1954 = vmatpush.bf16.msra.mxu0 %v1889
    %1955 = vmatpush.bf16.msra.mxu0 %v1888
    %1956 = vmatpush.bf16.msra.mxu0 %v1887
    %1957 = vmatpush.bf16.msra.mxu0 %v1886
    %1958 = vmatmul.bf16.gmra.mxu0 %v1686
    %v1959 = vpop.f32.mrf.mxu0
    %v1960 = vadd.f32 %v1756, %v1959
    %v1961 = vpop.f32.mrf.mxu0
    %v1962 = vadd.f32 %v1756, %v1961
    %1963 = vdwg.mxu0
    %1964 = vmatpush.bf16.msra.mxu0 %v1901
    %1965 = vmatpush.bf16.msra.mxu0 %v1900
    %1966 = vmatpush.bf16.msra.mxu0 %v1899
    %1967 = vmatpush.bf16.msra.mxu0 %v1898
    %1968 = vmatpush.bf16.msra.mxu0 %v1897
    %1969 = vmatpush.bf16.msra.mxu0 %v1896
    %1970 = vmatpush.bf16.msra.mxu0 %v1895
    %1971 = vmatpush.bf16.msra.mxu0 %v1894
    %1972 = vmatmul.bf16.gmra.mxu0 %v1687
    %v1973 = vpop.f32.mrf.mxu0
    %v1974 = vadd.f32 %v1960, %v1973
    %v1975 = vpop.f32.mrf.mxu0
    %v1976 = vadd.f32 %v1962, %v1975
    %1977 = vdwg.mxu0
    %1978 = vmatpush.bf16.msra.mxu0 %v1909
    %1979 = vmatpush.bf16.msra.mxu0 %v1908
    %1980 = vmatpush.bf16.msra.mxu0 %v1907
    %1981 = vmatpush.bf16.msra.mxu0 %v1906
    %1982 = vmatpush.bf16.msra.mxu0 %v1905
    %1983 = vmatpush.bf16.msra.mxu0 %v1904
    %1984 = vmatpush.bf16.msra.mxu0 %v1903
    %1985 = vmatpush.bf16.msra.mxu0 %v1902
    %1986 = vmatmul.bf16.gmra.mxu0 %v1688
    %v1987 = vpop.f32.mrf.mxu0
    %v1988 = vadd.f32 %v1974, %v1987
    %v1989 = vpop.f32.mrf.mxu0
    %v1990 = vadd.f32 %v1976, %v1989
    %1991 = vdwg.mxu0
    %1992 = vmatpush.bf16.msra.mxu0 %v1917
    %1993 = vmatpush.bf16.msra.mxu0 %v1916
    %1994 = vmatpush.bf16.msra.mxu0 %v1915
    %1995 = vmatpush.bf16.msra.mxu0 %v1914
    %1996 = vmatpush.bf16.msra.mxu0 %v1913
    %1997 = vmatpush.bf16.msra.mxu0 %v1912
    %1998 = vmatpush.bf16.msra.mxu0 %v1911
    %1999 = vmatpush.bf16.msra.mxu0 %v1910
    %2000 = vmatmul.bf16.gmra.mxu0 %v1689
    %v2001 = vpop.f32.mrf.mxu0
    %v2002 = vadd.f32 %v1988, %v2001
    %v2003 = vpop.f32.mrf.mxu0
    %v2004 = vadd.f32 %v1990, %v2003
    %2005 = vdwg.mxu0
    %v2006 = vpack.c.bf16 %v2002, %v2002
    %v2007 = vpack.c.bf16 %v2004, %v2004
    %2008 = vst [vmem:[%s5] sm:$0xf] %v2006
    %2009 = vst [vmem:[%s5 + $0x4] sm:$0xf] %v2007
    // Predicated region
    $region30: #{net_forward.1} parent=1 // pred_check
      _
    $region31: #{net_forward.1} parent=1 // pred_check_branch
      %2011 = sbr.rel (0) target = $region33
    $region32: #{net_forward.1} parent=1 // pred_region
      _
    $region33: #{net_forward.1} parent=1 // pred_fallthru
      _
    // Predicated region
    $region34: #{net_forward.1} parent=1 // pred_check
      _
    $region35: #{net_forward.1} parent=1 // pred_check_branch
      %2013 = sbr.rel (0) target = $region37
    $region36: #{net_forward.1} parent=1 // pred_region
      _
    $region37: #{net_forward.1} parent=1 // pred_fallthru
      _
    %2014 = vsyncpa [#allocation3], 1
    %2015 = vsyncpa [#allocation5], 1

</llo_original>
